<compile_context>
chip_gen: v6e
topology: v6e:2x2x1
jax: 0.10.0
libtpu: 0.0.40
codegen_flags: <defaults>
</compile_context>

<pallas_src>
import functools

import jax
import jax.numpy as jnp
import numpy as np
from jax.experimental import pallas as pl
from jax.experimental.pallas import tpu as pltpu

DH = 8             # dim_head
DE = 32            # dim_emb
D = DH * DE        # dim_in = 256
W5 = 5 * D         # folded projection width: [Wq | Wk | Wv | Wq@R | Wk@R]


def res_encoder_kernel(x_ref, w_ref, b_ref, cos_ref, sin_ref, hm_ref, bsum_ref,
                       mq_ref, mk_ref, o_ref):
    zb, K, _ = x_ref.shape
    C = K * DH
    rows = zb * K

    x = x_ref[...]                                   # (ZB, K, D)
    w = w_ref[...]                                   # (D, 5D)
    b = b_ref[...]                                   # (1, 5D)
    cos = cos_ref[...]                               # (K, D)   per-head tiled
    sin = sin_ref[...]                               # (K, D)
    hm = hm_ref[...]                                 # (DH, D)  head-lane indicator
    bsum = bsum_ref[...]                             # (C, C)   per-head sum-over-k matrix
    mq = mq_ref[...]                                 # (ZB, K, 1)  1.0 == masked (query pos)
    mk = mk_ref[...]                                 # (ZB, 1, C)  1.0 == masked (key pos, head-rep)

    # Fused projection (MXU): x @ [Wq|Wk|Wv|Wq@R|Wk@R] + b on a (ZB*K, D) slab.
    qkv = jnp.dot(x.reshape(rows, D), w, preferred_element_type=jnp.float32) + b
    qkv = qkv.reshape(zb, K, W5)

    # RoPE: rotate-half already folded into columns [3D:5D]; lane-dense multiplies only.
    q = qkv[..., 0 * D:1 * D] * cos + qkv[..., 3 * D:4 * D] * sin      # (ZB, K, D)
    k = qkv[..., 1 * D:2 * D] * cos + qkv[..., 4 * D:5 * D] * sin      # (ZB, K, D)
    vr = qkv[..., 2 * D:3 * D]
    v3 = vr * vr * vr                                                  # (ZB, K, D)

    # Head-expanded K / V: row c = k*DH + h keeps only head h's 32 lanes (rest zero).
    kx = (k[:, :, None, :] * hm).reshape(zb, C, D)                     # (ZB, C, D)
    vx = (v3[:, :, None, :] * hm).reshape(zb, C, D)                    # (ZB, C, D)

    # inf_cube: per-(k, h) inf-norm is now a plain lane max over the masked row.
    vmax = jnp.max(jnp.abs(vx), axis=-1, keepdims=True)                # (ZB, C, 1)
    v = vx * pl.reciprocal(jnp.maximum(vmax, 1e-38), approx=True)

    # Scores: s[z, q, k*DH+h] = <q[z,q,h,:], k[z,k,h,:]>  (batched MXU matmul).
    s = jnp.einsum('zqd,zcd->zqc', q, kx, preferred_element_type=jnp.float32)
    s = jnp.where((mq + mk) > 0.5, 0.0, s)                             # mask_q | mask_k

    # normed_square over the k axis: per-head sum via constant 0/1 (C, C) matmul.
    s2 = s * s
    denom = jnp.dot(s2.reshape(rows, C), bsum,
                    preferred_element_type=jnp.float32).reshape(zb, K, C)
    attn = s2 * pl.reciprocal(jnp.maximum(denom, 1e-38), approx=True)

    # out[z, q, h*DE+e] = sum_k attn[z, q, k*DH+h] * v[z, k, h, e]  (batched MXU matmul).
    out = jnp.einsum('zqc,zcd->zqd', attn, v, preferred_element_type=jnp.float32)

    o_ref[...] = x + out                                               # lane-dense store


def _fold_params(w, b, cos, sin):
    """Fold rotate-half RoPE into the projection weights; tile cos/sin to D lanes."""
    half = DE // 2
    r_blk = np.zeros((DE, DE), np.float32)
    r_blk[:half, half:] = np.eye(half, dtype=np.float32)    # rot(t) = concat(-t2, t1) == t @ r_blk
    r_blk[half:, :half] = -np.eye(half, dtype=np.float32)
    R = jnp.asarray(np.kron(np.eye(DH, dtype=np.float32), r_blk))      # (D, D) block-diag

    wq, wk, wv = w[:, 0:D], w[:, D:2 * D], w[:, 2 * D:3 * D]
    bq, bk, bv = b[0:D], b[D:2 * D], b[2 * D:3 * D]
    w_all = jnp.concatenate([wq, wk, wv, wq @ R, wk @ R], axis=1)      # (D, 5D)
    b_all = jnp.concatenate([bq, bk, bv, bq @ R, bk @ R])[None, :]     # (1, 5D)

    cos_t = jnp.tile(cos, (1, DH))                                     # (K, D)
    sin_t = jnp.tile(sin, (1, DH))
    return w_all, b_all, cos_t, sin_t


@functools.partial(jax.jit, static_argnames=("zb",))
def res_encoder_base(x, w, b, cos, sin, mask, zb=None):
    """x: (Z, K, D) f32; w: (D, 3D); b: (3D,); cos/sin: (K, DE); mask: (Z, K) f32 (1.0 == masked)."""
    Z, K, Dx = x.shape
    assert Dx == D
    C = K * DH

    if zb is None:
        # Fill the MXU's M dimension (~256 rows on v6e/v7x; 128 is enough on v5e) ...
        zb = min(Z, max(1, 256 // K))
        while Z % zb:
            zb -= 1
        # ... but keep >=2 grid steps when that still leaves >=128 rows per step
        # (v7x has 2 TensorCores; v5e/v6e have 1, so this is a no-op there).
        while Z // zb < 2 and zb > 1 and (zb // 2) * K >= 128 and Z % (zb // 2) == 0:
            zb //= 2
    assert Z % zb == 0

    w_all, b_all, cos_t, sin_t = _fold_params(w, b, cos, sin)
    hm = jnp.asarray(np.kron(np.eye(DH, dtype=np.float32),
                             np.ones((1, DE), np.float32)))            # (DH, D)
    bsum = jnp.asarray(np.tile(np.eye(DH, dtype=np.float32), (K, K)))  # (C, C)
    mask_q = mask.reshape(Z, K, 1)
    mask_k = jnp.repeat(mask, DH, axis=-1).reshape(Z, 1, C)            # head-repeated key mask

    # NOTE(v7x): for long sequences also tile the q axis so the (K, K*DH) score block
    # stays bounded, and size any vmem_limit_bytes against 64 MiB (not 128 MiB).
    return pl.pallas_call(
        res_encoder_kernel,
        out_shape=jax.ShapeDtypeStruct((Z, K, D), jnp.float32),
        grid=(Z // zb,),
        in_specs=[
            pl.BlockSpec((zb, K, D), lambda z: (z, 0, 0)),     # x        (per z-block)
            pl.BlockSpec((D, W5), lambda z: (0, 0)),           # folded W (resident)
            pl.BlockSpec((1, W5), lambda z: (0, 0)),           # folded bias
            pl.BlockSpec((K, D), lambda z: (0, 0)),            # cos (tiled to D lanes)
            pl.BlockSpec((K, D), lambda z: (0, 0)),            # sin (tiled to D lanes)
            pl.BlockSpec((DH, D), lambda z: (0, 0)),           # head-lane mask
            pl.BlockSpec((C, C), lambda z: (0, 0)),            # per-head sum-over-k matrix
            pl.BlockSpec((zb, K, 1), lambda z: (z, 0, 0)),     # mask (query form)
            pl.BlockSpec((zb, 1, C), lambda z: (z, 0, 0)),     # mask (key form, head-rep)
        ],
        out_specs=pl.BlockSpec((zb, K, D), lambda z: (z, 0, 0)),
        compiler_params=pltpu.CompilerParams(dimension_semantics=("parallel",)),
    )(x, w_all, b_all, cos_t, sin_t, hm, bsum, mask_q, mask_k)


def reference(x, w, b, cos, sin, mask):
    """Pure-JAX re-implementation of ResEncoderBase.forward for verification."""
    Z, K, _ = x.shape
    qkv = (x @ w + b).reshape(Z, K, 3, DH, DE)

    def rope(t):  # (Z, K, DH, DE)
        half = DE // 2
        rot = jnp.concatenate([-t[..., half:], t[..., :half]], axis=-1)
        return t * cos[None, :, None, :] + rot * sin[None, :, None, :]

    q = rope(qkv[:, :, 0])
    k = rope(qkv[:, :, 1])
    v3 = qkv[:, :, 2] ** 3
    v = v3 / jnp.maximum(jnp.max(jnp.abs(v3), axis=-1, keepdims=True), 1e-38)

    s = jnp.einsum('zqhe,zkhe->zqkh', q, k)
    mb = (mask[:, :, None, None] + mask[:, None, :, None]) > 0.5
    s = jnp.where(mb, 0.0, s)
    s2 = s ** 2
    attn = s2 / jnp.maximum(jnp.sum(s2, axis=-2, keepdims=True), 1e-38)
    out = jnp.einsum('zqkh,zkhe->zqhe', attn, v).reshape(Z, K, DH * DE)
    return x + out


if __name__ == "__main__":
    Z, K = 2, 8  # batch, sequence length

    key = jax.random.PRNGKey(0)
    kx, kw, kb = jax.random.split(key, 3)
    x = jax.random.normal(kx, (Z, K, D), dtype=jnp.float32)
    w = jax.random.normal(kw, (D, 3 * D), dtype=jnp.float32) * 0.05    # Linear weight (in, out)
    b = jax.random.normal(kb, (3 * D,), dtype=jnp.float32) * 0.01      # Linear bias

    # rotate-half RoPE tables
    pos = jnp.arange(K, dtype=jnp.float32)
    inv_freq = 1.0 / (10000.0 ** (jnp.arange(0, DE, 2, dtype=jnp.float32) / DE))
    freqs = pos[:, None] * inv_freq[None, :]                           # (K, DE//2)
    cos = jnp.concatenate([jnp.cos(freqs)] * 2, axis=-1)               # (K, DE)
    sin = jnp.concatenate([jnp.sin(freqs)] * 2, axis=-1)               # (K, DE)

    # mask: last position of batch 1 is masked out
    mask = jnp.zeros((Z, K), dtype=jnp.float32).at[1, K - 1].set(1.0)

    out = res_encoder_base(x, w, b, cos, sin, mask)
    out = jax.block_until_ready(out)

    ref = reference(x, w, b, cos, sin, mask)
    # 5e-3 band: the two pl.reciprocal(approx=True) divisions (EUP) loosen accuracy
    # slightly vs. the exact-division reference (exact division matches at 2e-3).
    np.testing.assert_allclose(np.asarray(out), np.asarray(ref), rtol=5e-3, atol=5e-3)
    print("KERNEL_OK")
</pallas_src>

<mosaic_0001>
module attributes {stable_mosaic.version = 11 : i64} {
  func.func @res_encoder_kernel(%arg0: i32, %arg1: memref<2x8x256xf32, #tpu.memory_space<vmem>>, %arg2: memref<256x1280xf32, #tpu.memory_space<vmem>>, %arg3: memref<1x1280xf32, #tpu.memory_space<vmem>>, %arg4: memref<8x256xf32, #tpu.memory_space<vmem>>, %arg5: memref<8x256xf32, #tpu.memory_space<vmem>>, %arg6: memref<8x256xf32, #tpu.memory_space<vmem>>, %arg7: memref<64x64xf32, #tpu.memory_space<vmem>>, %arg8: memref<2x8x1xf32, #tpu.memory_space<vmem>>, %arg9: memref<2x1x64xf32, #tpu.memory_space<vmem>>, %arg10: memref<2x8x256xf32, #tpu.memory_space<vmem>>) attributes {dimension_semantics = [#tpu.dimension_semantics<parallel>], iteration_bounds = array<i64: 1>, scalar_prefetch = 0 : i64, scratch_operands = 0 : i64, tpu.core_type = #tpu.core_type<tc>, window_params = [{transform_indices = @transform_0, window_bounds = array<i64: 2, 8, 256>}, {pipeline_mode = #tpu.pipeline_mode<synchronous>, transform_indices = @transform_1, window_bounds = array<i64: 256, 1280>}, {pipeline_mode = #tpu.pipeline_mode<synchronous>, transform_indices = @transform_2, window_bounds = array<i64: 1, 1280>}, {pipeline_mode = #tpu.pipeline_mode<synchronous>, transform_indices = @transform_3, window_bounds = array<i64: 8, 256>}, {pipeline_mode = #tpu.pipeline_mode<synchronous>, transform_indices = @transform_4, window_bounds = array<i64: 8, 256>}, {pipeline_mode = #tpu.pipeline_mode<synchronous>, transform_indices = @transform_5, window_bounds = array<i64: 8, 256>}, {pipeline_mode = #tpu.pipeline_mode<synchronous>, transform_indices = @transform_6, window_bounds = array<i64: 64, 64>}, {transform_indices = @transform_7, window_bounds = array<i64: 2, 8, 1>}, {transform_indices = @transform_8, window_bounds = array<i64: 2, 1, 64>}, {transform_indices = @transform_9, window_bounds = array<i64: 2, 8, 256>}]} {
    %c0 = arith.constant 0 : index
    %c0_0 = arith.constant 0 : index
    %c0_1 = arith.constant 0 : index
    %0 = vector.load %arg1[%c0, %c0_0, %c0_1] : memref<2x8x256xf32, #tpu.memory_space<vmem>>, vector<2x8x256xf32>
    %c0_2 = arith.constant 0 : index
    %c0_3 = arith.constant 0 : index
    %1 = vector.load %arg2[%c0_2, %c0_3] : memref<256x1280xf32, #tpu.memory_space<vmem>>, vector<256x1280xf32>
    %c0_4 = arith.constant 0 : index
    %c0_5 = arith.constant 0 : index
    %2 = vector.load %arg3[%c0_4, %c0_5] : memref<1x1280xf32, #tpu.memory_space<vmem>>, vector<1x1280xf32>
    %c0_6 = arith.constant 0 : index
    %c0_7 = arith.constant 0 : index
    %3 = vector.load %arg4[%c0_6, %c0_7] : memref<8x256xf32, #tpu.memory_space<vmem>>, vector<8x256xf32>
    %c0_8 = arith.constant 0 : index
    %c0_9 = arith.constant 0 : index
    %4 = vector.load %arg5[%c0_8, %c0_9] : memref<8x256xf32, #tpu.memory_space<vmem>>, vector<8x256xf32>
    %c0_10 = arith.constant 0 : index
    %c0_11 = arith.constant 0 : index
    %5 = vector.load %arg6[%c0_10, %c0_11] : memref<8x256xf32, #tpu.memory_space<vmem>>, vector<8x256xf32>
    %c0_12 = arith.constant 0 : index
    %c0_13 = arith.constant 0 : index
    %6 = vector.load %arg7[%c0_12, %c0_13] : memref<64x64xf32, #tpu.memory_space<vmem>>, vector<64x64xf32>
    %c0_14 = arith.constant 0 : index
    %c0_15 = arith.constant 0 : index
    %c0_16 = arith.constant 0 : index
    %7 = vector.load %arg8[%c0_14, %c0_15, %c0_16] : memref<2x8x1xf32, #tpu.memory_space<vmem>>, vector<2x8x1xf32>
    %c0_17 = arith.constant 0 : index
    %c0_18 = arith.constant 0 : index
    %c0_19 = arith.constant 0 : index
    %8 = vector.load %arg9[%c0_17, %c0_18, %c0_19] : memref<2x1x64xf32, #tpu.memory_space<vmem>>, vector<2x1x64xf32>
    %9 = vector.shape_cast %0 : vector<2x8x256xf32> to vector<16x256xf32>
    %cst = arith.constant dense<0.000000e+00> : vector<16x1280xf32>
    %10 = tpu.matmul %9, %1, %cst {dimension_numbers = #tpu.dot_dimension_numbers<[1], [0], [0], [1], [0, 0, 1, 1], [], []>} : vector<16x256xf32>, vector<256x1280xf32>, vector<16x1280xf32> -> vector<16x1280xf32>
    %11 = vector.broadcast %2 : vector<1x1280xf32> to vector<16x1280xf32>
    %12 = arith.addf %10, %11 : vector<16x1280xf32>
    %13 = vector.shape_cast %12 : vector<16x1280xf32> to vector<2x8x1280xf32>
    %14 = vector.extract_strided_slice %13 {offsets = [0, 0, 0], sizes = [2, 8, 256], strides = [1, 1, 1]} : vector<2x8x1280xf32> to vector<2x8x256xf32>
    %15 = vector.shape_cast %3 : vector<8x256xf32> to vector<1x8x256xf32>
    %16 = vector.broadcast %15 : vector<1x8x256xf32> to vector<2x8x256xf32>
    %17 = arith.mulf %14, %16 : vector<2x8x256xf32>
    %18 = vector.extract_strided_slice %13 {offsets = [0, 0, 768], sizes = [2, 8, 256], strides = [1, 1, 1]} : vector<2x8x1280xf32> to vector<2x8x256xf32>
    %19 = vector.shape_cast %4 : vector<8x256xf32> to vector<1x8x256xf32>
    %20 = vector.broadcast %19 : vector<1x8x256xf32> to vector<2x8x256xf32>
    %21 = arith.mulf %18, %20 : vector<2x8x256xf32>
    %22 = arith.addf %17, %21 : vector<2x8x256xf32>
    %23 = vector.extract_strided_slice %13 {offsets = [0, 0, 256], sizes = [2, 8, 256], strides = [1, 1, 1]} : vector<2x8x1280xf32> to vector<2x8x256xf32>
    %24 = vector.shape_cast %3 : vector<8x256xf32> to vector<1x8x256xf32>
    %25 = vector.broadcast %24 : vector<1x8x256xf32> to vector<2x8x256xf32>
    %26 = arith.mulf %23, %25 : vector<2x8x256xf32>
    %27 = vector.extract_strided_slice %13 {offsets = [0, 0, 1024], sizes = [2, 8, 256], strides = [1, 1, 1]} : vector<2x8x1280xf32> to vector<2x8x256xf32>
    %28 = vector.shape_cast %4 : vector<8x256xf32> to vector<1x8x256xf32>
    %29 = vector.broadcast %28 : vector<1x8x256xf32> to vector<2x8x256xf32>
    %30 = arith.mulf %27, %29 : vector<2x8x256xf32>
    %31 = arith.addf %26, %30 : vector<2x8x256xf32>
    %32 = vector.extract_strided_slice %13 {offsets = [0, 0, 512], sizes = [2, 8, 256], strides = [1, 1, 1]} : vector<2x8x1280xf32> to vector<2x8x256xf32>
    %33 = arith.mulf %32, %32 : vector<2x8x256xf32>
    %34 = arith.mulf %33, %32 : vector<2x8x256xf32>
    %35 = vector.shape_cast %31 : vector<2x8x256xf32> to vector<2x8x1x256xf32>
    %36 = vector.shape_cast %5 : vector<8x256xf32> to vector<1x1x8x256xf32>
    %37 = vector.broadcast %35 : vector<2x8x1x256xf32> to vector<2x8x8x256xf32>
    %38 = vector.broadcast %36 : vector<1x1x8x256xf32> to vector<2x8x8x256xf32>
    %39 = arith.mulf %37, %38 : vector<2x8x8x256xf32>
    %40 = vector.shape_cast %39 : vector<2x8x8x256xf32> to vector<2x64x256xf32>
    %41 = vector.shape_cast %34 : vector<2x8x256xf32> to vector<2x8x1x256xf32>
    %42 = vector.shape_cast %5 : vector<8x256xf32> to vector<1x1x8x256xf32>
    %43 = vector.broadcast %41 : vector<2x8x1x256xf32> to vector<2x8x8x256xf32>
    %44 = vector.broadcast %42 : vector<1x1x8x256xf32> to vector<2x8x8x256xf32>
    %45 = arith.mulf %43, %44 : vector<2x8x8x256xf32>
    %46 = vector.shape_cast %45 : vector<2x8x8x256xf32> to vector<2x64x256xf32>
    %47 = math.absf %46 : vector<2x64x256xf32>
    %cst_20 = arith.constant dense<0xFF800000> : vector<2x64xf32>
    %48 = vector.multi_reduction <maximumf>, %47, %cst_20 [2] : vector<2x64x256xf32> to vector<2x64xf32>
    %49 = vector.shape_cast %48 : vector<2x64xf32> to vector<2x64x1xf32>
    %cst_21 = arith.constant 9.99999935E-39 : f32
    %50 = vector.broadcast %cst_21 : f32 to vector<2x64x1xf32>
    %51 = arith.maximumf %49, %50 : vector<2x64x1xf32>
    %52 = tpu.reciprocal %51 {approx = true} : vector<2x64x1xf32> -> vector<2x64x1xf32>
    %53 = vector.broadcast %52 : vector<2x64x1xf32> to vector<2x64x256xf32>
    %54 = arith.mulf %46, %53 : vector<2x64x256xf32>
    "tpu.trace_start"() <{level = 10 : i32, message = "zqd,zcd->zqc"}> : () -> ()
    %cst_22 = arith.constant dense<0.000000e+00> : vector<2x8x64xf32>
    %55 = tpu.matmul %22, %40, %cst_22 {dimension_numbers = #tpu.dot_dimension_numbers<[2], [2], [1], [1], [0, 0, 0, 1, 1, 1], [0], [0]>} : vector<2x8x256xf32>, vector<2x64x256xf32>, vector<2x8x64xf32> -> vector<2x8x64xf32>
    "tpu.trace_stop"() : () -> ()
    %56 = vector.broadcast %7 : vector<2x8x1xf32> to vector<2x8x64xf32>
    %57 = vector.broadcast %8 : vector<2x1x64xf32> to vector<2x8x64xf32>
    %58 = arith.addf %56, %57 : vector<2x8x64xf32>
    %cst_23 = arith.constant 5.000000e-01 : f32
    %59 = vector.broadcast %cst_23 : f32 to vector<2x8x64xf32>
    %60 = arith.cmpf ogt, %58, %59 : vector<2x8x64xf32>
    %cst_24 = arith.constant 0.000000e+00 : f32
    %61 = vector.broadcast %cst_24 : f32 to vector<2x8x64xf32>
    %62 = arith.select %60, %61, %55 : vector<2x8x64xi1>, vector<2x8x64xf32>
    %63 = arith.mulf %62, %62 : vector<2x8x64xf32>
    %64 = vector.shape_cast %63 : vector<2x8x64xf32> to vector<16x64xf32>
    %cst_25 = arith.constant dense<0.000000e+00> : vector<16x64xf32>
    %65 = tpu.matmul %64, %6, %cst_25 {dimension_numbers = #tpu.dot_dimension_numbers<[1], [0], [0], [1], [0, 0, 1, 1], [], []>} : vector<16x64xf32>, vector<64x64xf32>, vector<16x64xf32> -> vector<16x64xf32>
    %66 = vector.shape_cast %65 : vector<16x64xf32> to vector<2x8x64xf32>
    %cst_26 = arith.constant 9.99999935E-39 : f32
    %67 = vector.broadcast %cst_26 : f32 to vector<2x8x64xf32>
    %68 = arith.maximumf %66, %67 : vector<2x8x64xf32>
    %69 = tpu.reciprocal %68 {approx = true} : vector<2x8x64xf32> -> vector<2x8x64xf32>
    %70 = arith.mulf %63, %69 : vector<2x8x64xf32>
    "tpu.trace_start"() <{level = 10 : i32, message = "zqc,zcd->zqd"}> : () -> ()
    %cst_27 = arith.constant dense<0.000000e+00> : vector<2x8x256xf32>
    %71 = tpu.matmul %70, %54, %cst_27 {dimension_numbers = #tpu.dot_dimension_numbers<[2], [1], [1], [2], [0, 0, 0, 1, 1, 2], [0], [0]>} : vector<2x8x64xf32>, vector<2x64x256xf32>, vector<2x8x256xf32> -> vector<2x8x256xf32>
    "tpu.trace_stop"() : () -> ()
    %72 = arith.addf %0, %71 : vector<2x8x256xf32>
    %c0_28 = arith.constant 0 : index
    %c0_29 = arith.constant 0 : index
    %c0_30 = arith.constant 0 : index
    %73 = vector.load %arg10[%c0_28, %c0_29, %c0_30] : memref<2x8x256xf32, #tpu.memory_space<vmem>>, vector<2x8x256xf32>
    tpu.vector_store %arg10[%c0_28, %c0_29, %c0_30], %72 {strides = array<i32>} : memref<2x8x256xf32, #tpu.memory_space<vmem>>, vector<2x8x256xf32>,
    return
  }
  func.func @transform_0(%arg0: i32) -> (i32, i32, i32) {
    %c0_i32 = arith.constant 0 : i32
    %c0_i32_0 = arith.constant 0 : i32
    %c0_i32_1 = arith.constant 0 : i32
    return %arg0, %c0_i32, %c0_i32_0 : i32, i32, i32
  }
  func.func @transform_1(%arg0: i32) -> (i32, i32) {
    %c0_i32 = arith.constant 0 : i32
    %c0_i32_0 = arith.constant 0 : i32
    %c0_i32_1 = arith.constant 0 : i32
    return %c0_i32, %c0_i32_0 : i32, i32
  }
  func.func @transform_2(%arg0: i32) -> (i32, i32) {
    %c0_i32 = arith.constant 0 : i32
    %c0_i32_0 = arith.constant 0 : i32
    %c0_i32_1 = arith.constant 0 : i32
    return %c0_i32, %c0_i32_0 : i32, i32
  }
  func.func @transform_3(%arg0: i32) -> (i32, i32) {
    %c0_i32 = arith.constant 0 : i32
    %c0_i32_0 = arith.constant 0 : i32
    %c0_i32_1 = arith.constant 0 : i32
    return %c0_i32, %c0_i32_0 : i32, i32
  }
  func.func @transform_4(%arg0: i32) -> (i32, i32) {
    %c0_i32 = arith.constant 0 : i32
    %c0_i32_0 = arith.constant 0 : i32
    %c0_i32_1 = arith.constant 0 : i32
    return %c0_i32, %c0_i32_0 : i32, i32
  }
  func.func @transform_5(%arg0: i32) -> (i32, i32) {
    %c0_i32 = arith.constant 0 : i32
    %c0_i32_0 = arith.constant 0 : i32
    %c0_i32_1 = arith.constant 0 : i32
    return %c0_i32, %c0_i32_0 : i32, i32
  }
  func.func @transform_6(%arg0: i32) -> (i32, i32) {
    %c0_i32 = arith.constant 0 : i32
    %c0_i32_0 = arith.constant 0 : i32
    %c0_i32_1 = arith.constant 0 : i32
    return %c0_i32, %c0_i32_0 : i32, i32
  }
  func.func @transform_7(%arg0: i32) -> (i32, i32, i32) {
    %c0_i32 = arith.constant 0 : i32
    %c0_i32_0 = arith.constant 0 : i32
    %c0_i32_1 = arith.constant 0 : i32
    return %arg0, %c0_i32, %c0_i32_0 : i32, i32, i32
  }
  func.func @transform_8(%arg0: i32) -> (i32, i32, i32) {
    %c0_i32 = arith.constant 0 : i32
    %c0_i32_0 = arith.constant 0 : i32
    %c0_i32_1 = arith.constant 0 : i32
    return %arg0, %c0_i32, %c0_i32_0 : i32, i32, i32
  }
  func.func @transform_9(%arg0: i32) -> (i32, i32, i32) {
    %c0_i32 = arith.constant 0 : i32
    %c0_i32_0 = arith.constant 0 : i32
    %c0_i32_1 = arith.constant 0 : i32
    return %arg0, %c0_i32, %c0_i32_0 : i32, i32, i32
  }
}

</mosaic_0001>

<llo_original>
// kernel: tile.14
$region0: #{tile.14}
  %s0 = inlined_call_operand.vmem [shape: f32[8,8,32], index: 0, kind: input, shape index: {}]
  %s1 = inlined_call_operand.vmem [shape: f32[8,256], index: 1, kind: output, shape index: {}]
  %v2 = vld [vmem:[%s0] ss:$4 sm:$0xff]
  %vm3 = vcmask 261120
  %4 = vst.msk [vmem:[%s1] ss:$8 sm:$0x3] %vm3, %v2
  %s5 = scalar_lea.vmem %s1, 4294967281
  %6 = vst.msk [vmem:[%s5] ss:$8 sm:$0xc] %vm3, %v2
  %s7 = scalar_lea.vmem %s1, 4294967266
  %8 = vst.msk [vmem:[%s7] ss:$8 sm:$0x30] %vm3, %v2
  %s9 = scalar_lea.vmem %s1, 4294967251
  %10 = vst.msk [vmem:[%s9] ss:$8 sm:$0xc0] %vm3, %v2
  %s11 = scalar_lea.vmem %s0, 32
  %v12 = vld [vmem:[%s11] ss:$4 sm:$0xff]
  %vm13 = vcmask 261120
  %s14 = scalar_lea.vmem %s1, 4
  %15 = vst.msk [vmem:[%s14] ss:$8 sm:$0x3] %vm13, %v12
  %s16 = scalar_lea.vmem %s1, 4294967285
  %17 = vst.msk [vmem:[%s16] ss:$8 sm:$0xc] %vm13, %v12
  %s18 = scalar_lea.vmem %s1, 4294967270
  %19 = vst.msk [vmem:[%s18] ss:$8 sm:$0x30] %vm13, %v12
  %s20 = scalar_lea.vmem %s1, 4294967255
  %21 = vst.msk [vmem:[%s20] ss:$8 sm:$0xc0] %vm13, %v12
  %s22 = scalar_lea.vmem %s0, 3
  %v23 = vld [vmem:[%s22] ss:$8 sm:$0xf]
  %s24 = scalar_lea.vmem %s0, 3
  %v25 = vld [vmem:[%s24] ss:$8 sm:$0xf0]
  %vm26 = vcmask 1047556
  %v27 = vsel %vm26, %v25, %v23
  %28 = vrot.lane.b32.xlu0 %v27, 96
  %v29 = vpop.permute.xlu0 %28
  %vm30 = vcmask 1048320
  %31 = vst.msk [vmem:[%s1] sm:$0xff] %vm30, %v29
  %s32 = scalar_lea.vmem %s0, 7
  %v33 = vld [vmem:[%s32] ss:$8 sm:$0xf]
  %s34 = scalar_lea.vmem %s0, 7
  %v35 = vld [vmem:[%s34] ss:$8 sm:$0xf0]
  %vm36 = vcmask 1047556
  %v37 = vsel %vm36, %v35, %v33
  %38 = vrot.lane.b32.xlu0 %v37, 96
  %v39 = vpop.permute.xlu0 %38
  %vm40 = vcmask 1048320
  %s41 = scalar_lea.vmem %s1, 8
  %42 = vst.msk [vmem:[%s41] sm:$0xff] %vm40, %v39
  %s43 = scalar_lea.vmem %s0, 2
  %v44 = vld [vmem:[%s43] ss:$8 sm:$0xf]
  %s45 = scalar_lea.vmem %s0, 2
  %v46 = vld [vmem:[%s45] ss:$8 sm:$0xf0]
  %vm47 = vcmask 1047556
  %v48 = vsel %vm47, %v46, %v44
  %49 = vrot.lane.b32.xlu0 %v48, 64
  %v50 = vpop.permute.xlu0 %49
  %vm51 = vcmask 785920
  %52 = vst.msk [vmem:[%s1] sm:$0xff] %vm51, %v50
  %s53 = scalar_lea.vmem %s0, 6
  %v54 = vld [vmem:[%s53] ss:$8 sm:$0xf]
  %s55 = scalar_lea.vmem %s0, 6
  %v56 = vld [vmem:[%s55] ss:$8 sm:$0xf0]
  %vm57 = vcmask 1047556
  %v58 = vsel %vm57, %v56, %v54
  %59 = vrot.lane.b32.xlu0 %v58, 64
  %v60 = vpop.permute.xlu0 %59
  %vm61 = vcmask 785920
  %s62 = scalar_lea.vmem %s1, 8
  %63 = vst.msk [vmem:[%s62] sm:$0xff] %vm61, %v60
  %s64 = scalar_lea.vmem %s0, 1
  %v65 = vld [vmem:[%s64] ss:$8 sm:$0xf]
  %s66 = scalar_lea.vmem %s0, 1
  %v67 = vld [vmem:[%s66] ss:$8 sm:$0xf0]
  %vm68 = vcmask 1047556
  %v69 = vsel %vm68, %v67, %v65
  %70 = vrot.lane.b32.xlu0 %v69, 32
  %v71 = vpop.permute.xlu0 %70
  %vm72 = vcmask 523520
  %73 = vst.msk [vmem:[%s1] sm:$0xff] %vm72, %v71
  %s74 = scalar_lea.vmem %s0, 5
  %v75 = vld [vmem:[%s74] ss:$8 sm:$0xf]
  %s76 = scalar_lea.vmem %s0, 5
  %v77 = vld [vmem:[%s76] ss:$8 sm:$0xf0]
  %vm78 = vcmask 1047556
  %v79 = vsel %vm78, %v77, %v75
  %80 = vrot.lane.b32.xlu0 %v79, 32
  %v81 = vpop.permute.xlu0 %80
  %vm82 = vcmask 523520
  %s83 = scalar_lea.vmem %s1, 8
  %84 = vst.msk [vmem:[%s83] sm:$0xff] %vm82, %v81

// kernel: res_encoder_base.1
$region0: #{res_encoder_base.1}
  #allocation0 [shape = 'u32[]', space=smem, size = 0x4, offset = 0x4, fixed_abs, tag = 'smem constant byte address 0x4 - core index']
  #allocation1 [shape = 'u32[144,128]{1,0:T(1,128)}', space=vmem, size = 0x12000, scoped, tag = 'internal scratch']
  %s0 = inlined_call_operand.vmem [shape: f32[2,8,256], index: 0, kind: input, shape index: {}]
  %s1 = inlined_call_operand.vmem [shape: f32[256,1280], index: 1, kind: input, shape index: {}]
  %s2 = inlined_call_operand.vmem [shape: f32[1,1280], index: 2, kind: input, shape index: {}]
  %s3 = inlined_call_operand.vmem [shape: f32[8,256], index: 3, kind: input, shape index: {}]
  %s4 = inlined_call_operand.vmem [shape: f32[8,256], index: 4, kind: input, shape index: {}]
  %s5 = inlined_call_operand.vmem [shape: f32[8,256], index: 5, kind: input, shape index: {}]
  %s6 = inlined_call_operand.vmem [shape: f32[64,64], index: 6, kind: input, shape index: {}]
  %s7 = inlined_call_operand.vmem [shape: f32[2,8,1], index: 7, kind: input, shape index: {}]
  %s8 = inlined_call_operand.vmem [shape: f32[2,1,64], index: 8, kind: input, shape index: {}]
  %s9 = inlined_call_operand.hbm [shape: f32[2,8,256], index: 9, kind: output, shape index: {}]
  %s10 = sld [smem:[#allocation0]]
  $region46: #{res_encoder_base.1} parent=0
    _
  %s12 = ssub.s32 1, %s10
  %s13 = scalar_select 0, %s12, %s10
  $region1: #{res_encoder_base.1} parent=0
    #allocation2 [shape = 'u8[16384]{0}', space=vmem, size = 0x4000, scoped, tag = 'output window, operand 0, single buffered']
    #allocation3 [shape = 's32[1]{0}', space=sflag, size = 0x4, scoped, tag = 'scoped memory for res_encoder_base.1']
    %14 = vsyncpa [#allocation3], 0
    // Predicated region
    $region2: #{res_encoder_base.1} parent=1 // pred_check
      _
    $region3: #{res_encoder_base.1} parent=1 // pred_check_branch
      %16 = sbr.rel (0) target = $region5
    $region4: #{res_encoder_base.1} parent=1 // pred_region
      _
    $region5: #{res_encoder_base.1} parent=1 // pred_fallthru
      _
    // Predicated region
    $region6: #{res_encoder_base.1} parent=1 // pred_check
      _
    $region7: #{res_encoder_base.1} parent=1 // pred_check_branch
      %18 = sbr.rel (0) target = $region9
    $region8: #{res_encoder_base.1} parent=1 // pred_region
      _
    $region9: #{res_encoder_base.1} parent=1 // pred_fallthru
      _
    // Predicated region
    $region10: #{res_encoder_base.1} parent=1 // pred_check
      _
    $region11: #{res_encoder_base.1} parent=1 // pred_check_branch
      %20 = sbr.rel (0) target = $region13
    $region12: #{res_encoder_base.1} parent=1 // pred_region
      _
    $region13: #{res_encoder_base.1} parent=1 // pred_fallthru
      _
    // Predicated region
    $region14: #{res_encoder_base.1} parent=1 // pred_check
      _
    $region15: #{res_encoder_base.1} parent=1 // pred_check_branch
      %22 = sbr.rel (0) target = $region17
    $region16: #{res_encoder_base.1} parent=1 // pred_region
      _
    $region17: #{res_encoder_base.1} parent=1 // pred_fallthru
      _
    // Predicated region
    $region18: #{res_encoder_base.1} parent=1 // pred_check
      _
    $region19: #{res_encoder_base.1} parent=1 // pred_check_branch
      %24 = sbr.rel (0) target = $region21
    $region20: #{res_encoder_base.1} parent=1 // pred_region
      _
    $region21: #{res_encoder_base.1} parent=1 // pred_fallthru
      _
    // Predicated region
    $region22: #{res_encoder_base.1} parent=1 // pred_check
      _
    $region23: #{res_encoder_base.1} parent=1 // pred_check_branch
      %26 = sbr.rel (0) target = $region25
    $region24: #{res_encoder_base.1} parent=1 // pred_region
      _
    $region25: #{res_encoder_base.1} parent=1 // pred_fallthru
      _
    // Predicated region
    $region26: #{res_encoder_base.1} parent=1 // pred_check
      _
    $region27: #{res_encoder_base.1} parent=1 // pred_check_branch
      %28 = sbr.rel (0) target = $region29
    $region28: #{res_encoder_base.1} parent=1 // pred_region
      _
    $region29: #{res_encoder_base.1} parent=1 // pred_fallthru
      _
    // Predicated region
    $region30: #{res_encoder_base.1} parent=1 // pred_check
      _
    $region31: #{res_encoder_base.1} parent=1 // pred_check_branch
      %30 = sbr.rel (0) target = $region33
    $region32: #{res_encoder_base.1} parent=1 // pred_region
      _
    $region33: #{res_encoder_base.1} parent=1 // pred_fallthru
      _
    // Predicated region
    $region34: #{res_encoder_base.1} parent=1 // pred_check
      _
    $region35: #{res_encoder_base.1} parent=1 // pred_check_branch
      %32 = sbr.rel (0) target = $region37
    $region36: #{res_encoder_base.1} parent=1 // pred_region
      _
    $region37: #{res_encoder_base.1} parent=1 // pred_fallthru
      _
    %v33 = vld [vmem:[%s0] sm:$0xff]
    %v34 = vld [vmem:[%s0 + $0x8] sm:$0xff]
    %v35 = vld [vmem:[%s0 + $0x10] sm:$0xff]
    %v36 = vld [vmem:[%s0 + $0x18] sm:$0xff]
    %v37 = vld [vmem:[%s1] sm:$0xff]
    %v38 = vld [vmem:[%s1 + $0x8] sm:$0xff]
    %v39 = vld [vmem:[%s1 + $0x10] sm:$0xff]
    %v40 = vld [vmem:[%s1 + $0x18] sm:$0xff]
    %v41 = vld [vmem:[%s1 + $0x20] sm:$0xff]
    %v42 = vld [vmem:[%s1 + $0x28] sm:$0xff]
    %v43 = vld [vmem:[%s1 + $0x30] sm:$0xff]
    %v44 = vld [vmem:[%s1 + $0x38] sm:$0xff]
    %v45 = vld [vmem:[%s1 + $0x40] sm:$0xff]
    %v46 = vld [vmem:[%s1 + $0x48] sm:$0xff]
    %v47 = vld [vmem:[%s1 + $0x50] sm:$0xff]
    %v48 = vld [vmem:[%s1 + $0x58] sm:$0xff]
    %v49 = vld [vmem:[%s1 + $0x60] sm:$0xff]
    %v50 = vld [vmem:[%s1 + $0x68] sm:$0xff]
    %v51 = vld [vmem:[%s1 + $0x70] sm:$0xff]
    %v52 = vld [vmem:[%s1 + $0x78] sm:$0xff]
    %v53 = vld [vmem:[%s1 + $0x80] sm:$0xff]
    %v54 = vld [vmem:[%s1 + $0x88] sm:$0xff]
    %v55 = vld [vmem:[%s1 + $0x90] sm:$0xff]
    %v56 = vld [vmem:[%s1 + $0x98] sm:$0xff]
    %v57 = vld [vmem:[%s1 + $0xa0] sm:$0xff]
    %v58 = vld [vmem:[%s1 + $0xa8] sm:$0xff]
    %v59 = vld [vmem:[%s1 + $0xb0] sm:$0xff]
    %v60 = vld [vmem:[%s1 + $0xb8] sm:$0xff]
    %v61 = vld [vmem:[%s1 + $0xc0] sm:$0xff]
    %v62 = vld [vmem:[%s1 + $0xc8] sm:$0xff]
    %v63 = vld [vmem:[%s1 + $0xd0] sm:$0xff]
    %v64 = vld [vmem:[%s1 + $0xd8] sm:$0xff]
    %v65 = vld [vmem:[%s1 + $0xe0] sm:$0xff]
    %v66 = vld [vmem:[%s1 + $0xe8] sm:$0xff]
    %v67 = vld [vmem:[%s1 + $0xf0] sm:$0xff]
    %v68 = vld [vmem:[%s1 + $0xf8] sm:$0xff]
    %v69 = vld [vmem:[%s1 + $0x100] sm:$0xff]
    %v70 = vld [vmem:[%s1 + $0x108] sm:$0xff]
    %v71 = vld [vmem:[%s1 + $0x110] sm:$0xff]
    %v72 = vld [vmem:[%s1 + $0x118] sm:$0xff]
    %v73 = vld [vmem:[%s1 + $0x120] sm:$0xff]
    %v74 = vld [vmem:[%s1 + $0x128] sm:$0xff]
    %v75 = vld [vmem:[%s1 + $0x130] sm:$0xff]
    %v76 = vld [vmem:[%s1 + $0x138] sm:$0xff]
    %v77 = vld [vmem:[%s1 + $0x140] sm:$0xff]
    %v78 = vld [vmem:[%s1 + $0x148] sm:$0xff]
    %v79 = vld [vmem:[%s1 + $0x150] sm:$0xff]
    %v80 = vld [vmem:[%s1 + $0x158] sm:$0xff]
    %v81 = vld [vmem:[%s1 + $0x160] sm:$0xff]
    %v82 = vld [vmem:[%s1 + $0x168] sm:$0xff]
    %v83 = vld [vmem:[%s1 + $0x170] sm:$0xff]
    %v84 = vld [vmem:[%s1 + $0x178] sm:$0xff]
    %v85 = vld [vmem:[%s1 + $0x180] sm:$0xff]
    %v86 = vld [vmem:[%s1 + $0x188] sm:$0xff]
    %v87 = vld [vmem:[%s1 + $0x190] sm:$0xff]
    %v88 = vld [vmem:[%s1 + $0x198] sm:$0xff]
    %v89 = vld [vmem:[%s1 + $0x1a0] sm:$0xff]
    %v90 = vld [vmem:[%s1 + $0x1a8] sm:$0xff]
    %v91 = vld [vmem:[%s1 + $0x1b0] sm:$0xff]
    %v92 = vld [vmem:[%s1 + $0x1b8] sm:$0xff]
    %v93 = vld [vmem:[%s1 + $0x1c0] sm:$0xff]
    %v94 = vld [vmem:[%s1 + $0x1c8] sm:$0xff]
    %v95 = vld [vmem:[%s1 + $0x1d0] sm:$0xff]
    %v96 = vld [vmem:[%s1 + $0x1d8] sm:$0xff]
    %v97 = vld [vmem:[%s1 + $0x1e0] sm:$0xff]
    %v98 = vld [vmem:[%s1 + $0x1e8] sm:$0xff]
    %v99 = vld [vmem:[%s1 + $0x1f0] sm:$0xff]
    %v100 = vld [vmem:[%s1 + $0x1f8] sm:$0xff]
    %v101 = vld [vmem:[%s1 + $0x200] sm:$0xff]
    %v102 = vld [vmem:[%s1 + $0x208] sm:$0xff]
    %v103 = vld [vmem:[%s1 + $0x210] sm:$0xff]
    %v104 = vld [vmem:[%s1 + $0x218] sm:$0xff]
    %v105 = vld [vmem:[%s1 + $0x220] sm:$0xff]
    %v106 = vld [vmem:[%s1 + $0x228] sm:$0xff]
    %v107 = vld [vmem:[%s1 + $0x230] sm:$0xff]
    %v108 = vld [vmem:[%s1 + $0x238] sm:$0xff]
    %v109 = vld [vmem:[%s1 + $0x240] sm:$0xff]
    %v110 = vld [vmem:[%s1 + $0x248] sm:$0xff]
    %v111 = vld [vmem:[%s1 + $0x250] sm:$0xff]
    %v112 = vld [vmem:[%s1 + $0x258] sm:$0xff]
    %v113 = vld [vmem:[%s1 + $0x260] sm:$0xff]
    %v114 = vld [vmem:[%s1 + $0x268] sm:$0xff]
    %v115 = vld [vmem:[%s1 + $0x270] sm:$0xff]
    %v116 = vld [vmem:[%s1 + $0x278] sm:$0xff]
    %v117 = vld [vmem:[%s1 + $0x280] sm:$0xff]
    %v118 = vld [vmem:[%s1 + $0x288] sm:$0xff]
    %v119 = vld [vmem:[%s1 + $0x290] sm:$0xff]
    %v120 = vld [vmem:[%s1 + $0x298] sm:$0xff]
    %v121 = vld [vmem:[%s1 + $0x2a0] sm:$0xff]
    %v122 = vld [vmem:[%s1 + $0x2a8] sm:$0xff]
    %v123 = vld [vmem:[%s1 + $0x2b0] sm:$0xff]
    %v124 = vld [vmem:[%s1 + $0x2b8] sm:$0xff]
    %v125 = vld [vmem:[%s1 + $0x2c0] sm:$0xff]
    %v126 = vld [vmem:[%s1 + $0x2c8] sm:$0xff]
    %v127 = vld [vmem:[%s1 + $0x2d0] sm:$0xff]
    %v128 = vld [vmem:[%s1 + $0x2d8] sm:$0xff]
    %v129 = vld [vmem:[%s1 + $0x2e0] sm:$0xff]
    %v130 = vld [vmem:[%s1 + $0x2e8] sm:$0xff]
    %v131 = vld [vmem:[%s1 + $0x2f0] sm:$0xff]
    %v132 = vld [vmem:[%s1 + $0x2f8] sm:$0xff]
    %v133 = vld [vmem:[%s1 + $0x300] sm:$0xff]
    %v134 = vld [vmem:[%s1 + $0x308] sm:$0xff]
    %v135 = vld [vmem:[%s1 + $0x310] sm:$0xff]
    %v136 = vld [vmem:[%s1 + $0x318] sm:$0xff]
    %v137 = vld [vmem:[%s1 + $0x320] sm:$0xff]
    %v138 = vld [vmem:[%s1 + $0x328] sm:$0xff]
    %v139 = vld [vmem:[%s1 + $0x330] sm:$0xff]
    %v140 = vld [vmem:[%s1 + $0x338] sm:$0xff]
    %v141 = vld [vmem:[%s1 + $0x340] sm:$0xff]
    %v142 = vld [vmem:[%s1 + $0x348] sm:$0xff]
    %v143 = vld [vmem:[%s1 + $0x350] sm:$0xff]
    %v144 = vld [vmem:[%s1 + $0x358] sm:$0xff]
    %v145 = vld [vmem:[%s1 + $0x360] sm:$0xff]
    %v146 = vld [vmem:[%s1 + $0x368] sm:$0xff]
    %v147 = vld [vmem:[%s1 + $0x370] sm:$0xff]
    %v148 = vld [vmem:[%s1 + $0x378] sm:$0xff]
    %v149 = vld [vmem:[%s1 + $0x380] sm:$0xff]
    %v150 = vld [vmem:[%s1 + $0x388] sm:$0xff]
    %v151 = vld [vmem:[%s1 + $0x390] sm:$0xff]
    %v152 = vld [vmem:[%s1 + $0x398] sm:$0xff]
    %v153 = vld [vmem:[%s1 + $0x3a0] sm:$0xff]
    %v154 = vld [vmem:[%s1 + $0x3a8] sm:$0xff]
    %v155 = vld [vmem:[%s1 + $0x3b0] sm:$0xff]
    %v156 = vld [vmem:[%s1 + $0x3b8] sm:$0xff]
    %v157 = vld [vmem:[%s1 + $0x3c0] sm:$0xff]
    %v158 = vld [vmem:[%s1 + $0x3c8] sm:$0xff]
    %v159 = vld [vmem:[%s1 + $0x3d0] sm:$0xff]
    %v160 = vld [vmem:[%s1 + $0x3d8] sm:$0xff]
    %v161 = vld [vmem:[%s1 + $0x3e0] sm:$0xff]
    %v162 = vld [vmem:[%s1 + $0x3e8] sm:$0xff]
    %v163 = vld [vmem:[%s1 + $0x3f0] sm:$0xff]
    %v164 = vld [vmem:[%s1 + $0x3f8] sm:$0xff]
    %v165 = vld [vmem:[%s1 + $0x400] sm:$0xff]
    %v166 = vld [vmem:[%s1 + $0x408] sm:$0xff]
    %v167 = vld [vmem:[%s1 + $0x410] sm:$0xff]
    %v168 = vld [vmem:[%s1 + $0x418] sm:$0xff]
    %v169 = vld [vmem:[%s1 + $0x420] sm:$0xff]
    %v170 = vld [vmem:[%s1 + $0x428] sm:$0xff]
    %v171 = vld [vmem:[%s1 + $0x430] sm:$0xff]
    %v172 = vld [vmem:[%s1 + $0x438] sm:$0xff]
    %v173 = vld [vmem:[%s1 + $0x440] sm:$0xff]
    %v174 = vld [vmem:[%s1 + $0x448] sm:$0xff]
    %v175 = vld [vmem:[%s1 + $0x450] sm:$0xff]
    %v176 = vld [vmem:[%s1 + $0x458] sm:$0xff]
    %v177 = vld [vmem:[%s1 + $0x460] sm:$0xff]
    %v178 = vld [vmem:[%s1 + $0x468] sm:$0xff]
    %v179 = vld [vmem:[%s1 + $0x470] sm:$0xff]
    %v180 = vld [vmem:[%s1 + $0x478] sm:$0xff]
    %v181 = vld [vmem:[%s1 + $0x480] sm:$0xff]
    %v182 = vld [vmem:[%s1 + $0x488] sm:$0xff]
    %v183 = vld [vmem:[%s1 + $0x490] sm:$0xff]
    %v184 = vld [vmem:[%s1 + $0x498] sm:$0xff]
    %v185 = vld [vmem:[%s1 + $0x4a0] sm:$0xff]
    %v186 = vld [vmem:[%s1 + $0x4a8] sm:$0xff]
    %v187 = vld [vmem:[%s1 + $0x4b0] sm:$0xff]
    %v188 = vld [vmem:[%s1 + $0x4b8] sm:$0xff]
    %v189 = vld [vmem:[%s1 + $0x4c0] sm:$0xff]
    %v190 = vld [vmem:[%s1 + $0x4c8] sm:$0xff]
    %v191 = vld [vmem:[%s1 + $0x4d0] sm:$0xff]
    %v192 = vld [vmem:[%s1 + $0x4d8] sm:$0xff]
    %v193 = vld [vmem:[%s1 + $0x4e0] sm:$0xff]
    %v194 = vld [vmem:[%s1 + $0x4e8] sm:$0xff]
    %v195 = vld [vmem:[%s1 + $0x4f0] sm:$0xff]
    %v196 = vld [vmem:[%s1 + $0x4f8] sm:$0xff]
    %v197 = vld [vmem:[%s1 + $0x500] sm:$0xff]
    %v198 = vld [vmem:[%s1 + $0x508] sm:$0xff]
    %v199 = vld [vmem:[%s1 + $0x510] sm:$0xff]
    %v200 = vld [vmem:[%s1 + $0x518] sm:$0xff]
    %v201 = vld [vmem:[%s1 + $0x520] sm:$0xff]
    %v202 = vld [vmem:[%s1 + $0x528] sm:$0xff]
    %v203 = vld [vmem:[%s1 + $0x530] sm:$0xff]
    %v204 = vld [vmem:[%s1 + $0x538] sm:$0xff]
    %v205 = vld [vmem:[%s1 + $0x540] sm:$0xff]
    %v206 = vld [vmem:[%s1 + $0x548] sm:$0xff]
    %v207 = vld [vmem:[%s1 + $0x550] sm:$0xff]
    %v208 = vld [vmem:[%s1 + $0x558] sm:$0xff]
    %v209 = vld [vmem:[%s1 + $0x560] sm:$0xff]
    %v210 = vld [vmem:[%s1 + $0x568] sm:$0xff]
    %v211 = vld [vmem:[%s1 + $0x570] sm:$0xff]
    %v212 = vld [vmem:[%s1 + $0x578] sm:$0xff]
    %v213 = vld [vmem:[%s1 + $0x580] sm:$0xff]
    %v214 = vld [vmem:[%s1 + $0x588] sm:$0xff]
    %v215 = vld [vmem:[%s1 + $0x590] sm:$0xff]
    %v216 = vld [vmem:[%s1 + $0x598] sm:$0xff]
    %v217 = vld [vmem:[%s1 + $0x5a0] sm:$0xff]
    %v218 = vld [vmem:[%s1 + $0x5a8] sm:$0xff]
    %v219 = vld [vmem:[%s1 + $0x5b0] sm:$0xff]
    %v220 = vld [vmem:[%s1 + $0x5b8] sm:$0xff]
    %v221 = vld [vmem:[%s1 + $0x5c0] sm:$0xff]
    %v222 = vld [vmem:[%s1 + $0x5c8] sm:$0xff]
    %v223 = vld [vmem:[%s1 + $0x5d0] sm:$0xff]
    %v224 = vld [vmem:[%s1 + $0x5d8] sm:$0xff]
    %v225 = vld [vmem:[%s1 + $0x5e0] sm:$0xff]
    %v226 = vld [vmem:[%s1 + $0x5e8] sm:$0xff]
    %v227 = vld [vmem:[%s1 + $0x5f0] sm:$0xff]
    %v228 = vld [vmem:[%s1 + $0x5f8] sm:$0xff]
    %v229 = vld [vmem:[%s1 + $0x600] sm:$0xff]
    %v230 = vld [vmem:[%s1 + $0x608] sm:$0xff]
    %v231 = vld [vmem:[%s1 + $0x610] sm:$0xff]
    %v232 = vld [vmem:[%s1 + $0x618] sm:$0xff]
    %v233 = vld [vmem:[%s1 + $0x620] sm:$0xff]
    %v234 = vld [vmem:[%s1 + $0x628] sm:$0xff]
    %v235 = vld [vmem:[%s1 + $0x630] sm:$0xff]
    %v236 = vld [vmem:[%s1 + $0x638] sm:$0xff]
    %v237 = vld [vmem:[%s1 + $0x640] sm:$0xff]
    %v238 = vld [vmem:[%s1 + $0x648] sm:$0xff]
    %v239 = vld [vmem:[%s1 + $0x650] sm:$0xff]
    %v240 = vld [vmem:[%s1 + $0x658] sm:$0xff]
    %v241 = vld [vmem:[%s1 + $0x660] sm:$0xff]
    %v242 = vld [vmem:[%s1 + $0x668] sm:$0xff]
    %v243 = vld [vmem:[%s1 + $0x670] sm:$0xff]
    %v244 = vld [vmem:[%s1 + $0x678] sm:$0xff]
    %v245 = vld [vmem:[%s1 + $0x680] sm:$0xff]
    %v246 = vld [vmem:[%s1 + $0x688] sm:$0xff]
    %v247 = vld [vmem:[%s1 + $0x690] sm:$0xff]
    %v248 = vld [vmem:[%s1 + $0x698] sm:$0xff]
    %v249 = vld [vmem:[%s1 + $0x6a0] sm:$0xff]
    %v250 = vld [vmem:[%s1 + $0x6a8] sm:$0xff]
    %v251 = vld [vmem:[%s1 + $0x6b0] sm:$0xff]
    %v252 = vld [vmem:[%s1 + $0x6b8] sm:$0xff]
    %v253 = vld [vmem:[%s1 + $0x6c0] sm:$0xff]
    %v254 = vld [vmem:[%s1 + $0x6c8] sm:$0xff]
    %v255 = vld [vmem:[%s1 + $0x6d0] sm:$0xff]
    %v256 = vld [vmem:[%s1 + $0x6d8] sm:$0xff]
    %v257 = vld [vmem:[%s1 + $0x6e0] sm:$0xff]
    %v258 = vld [vmem:[%s1 + $0x6e8] sm:$0xff]
    %v259 = vld [vmem:[%s1 + $0x6f0] sm:$0xff]
    %v260 = vld [vmem:[%s1 + $0x6f8] sm:$0xff]
    %v261 = vld [vmem:[%s1 + $0x700] sm:$0xff]
    %v262 = vld [vmem:[%s1 + $0x708] sm:$0xff]
    %v263 = vld [vmem:[%s1 + $0x710] sm:$0xff]
    %v264 = vld [vmem:[%s1 + $0x718] sm:$0xff]
    %v265 = vld [vmem:[%s1 + $0x720] sm:$0xff]
    %v266 = vld [vmem:[%s1 + $0x728] sm:$0xff]
    %v267 = vld [vmem:[%s1 + $0x730] sm:$0xff]
    %v268 = vld [vmem:[%s1 + $0x738] sm:$0xff]
    %v269 = vld [vmem:[%s1 + $0x740] sm:$0xff]
    %v270 = vld [vmem:[%s1 + $0x748] sm:$0xff]
    %v271 = vld [vmem:[%s1 + $0x750] sm:$0xff]
    %v272 = vld [vmem:[%s1 + $0x758] sm:$0xff]
    %v273 = vld [vmem:[%s1 + $0x760] sm:$0xff]
    %v274 = vld [vmem:[%s1 + $0x768] sm:$0xff]
    %v275 = vld [vmem:[%s1 + $0x770] sm:$0xff]
    %v276 = vld [vmem:[%s1 + $0x778] sm:$0xff]
    %v277 = vld [vmem:[%s1 + $0x780] sm:$0xff]
    %v278 = vld [vmem:[%s1 + $0x788] sm:$0xff]
    %v279 = vld [vmem:[%s1 + $0x790] sm:$0xff]
    %v280 = vld [vmem:[%s1 + $0x798] sm:$0xff]
    %v281 = vld [vmem:[%s1 + $0x7a0] sm:$0xff]
    %v282 = vld [vmem:[%s1 + $0x7a8] sm:$0xff]
    %v283 = vld [vmem:[%s1 + $0x7b0] sm:$0xff]
    %v284 = vld [vmem:[%s1 + $0x7b8] sm:$0xff]
    %v285 = vld [vmem:[%s1 + $0x7c0] sm:$0xff]
    %v286 = vld [vmem:[%s1 + $0x7c8] sm:$0xff]
    %v287 = vld [vmem:[%s1 + $0x7d0] sm:$0xff]
    %v288 = vld [vmem:[%s1 + $0x7d8] sm:$0xff]
    %v289 = vld [vmem:[%s1 + $0x7e0] sm:$0xff]
    %v290 = vld [vmem:[%s1 + $0x7e8] sm:$0xff]
    %v291 = vld [vmem:[%s1 + $0x7f0] sm:$0xff]
    %v292 = vld [vmem:[%s1 + $0x7f8] sm:$0xff]
    %v293 = vld [vmem:[%s1 + $0x800] sm:$0xff]
    %v294 = vld [vmem:[%s1 + $0x808] sm:$0xff]
    %v295 = vld [vmem:[%s1 + $0x810] sm:$0xff]
    %v296 = vld [vmem:[%s1 + $0x818] sm:$0xff]
    %v297 = vld [vmem:[%s1 + $0x820] sm:$0xff]
    %v298 = vld [vmem:[%s1 + $0x828] sm:$0xff]
    %v299 = vld [vmem:[%s1 + $0x830] sm:$0xff]
    %v300 = vld [vmem:[%s1 + $0x838] sm:$0xff]
    %v301 = vld [vmem:[%s1 + $0x840] sm:$0xff]
    %v302 = vld [vmem:[%s1 + $0x848] sm:$0xff]
    %v303 = vld [vmem:[%s1 + $0x850] sm:$0xff]
    %v304 = vld [vmem:[%s1 + $0x858] sm:$0xff]
    %v305 = vld [vmem:[%s1 + $0x860] sm:$0xff]
    %v306 = vld [vmem:[%s1 + $0x868] sm:$0xff]
    %v307 = vld [vmem:[%s1 + $0x870] sm:$0xff]
    %v308 = vld [vmem:[%s1 + $0x878] sm:$0xff]
    %v309 = vld [vmem:[%s1 + $0x880] sm:$0xff]
    %v310 = vld [vmem:[%s1 + $0x888] sm:$0xff]
    %v311 = vld [vmem:[%s1 + $0x890] sm:$0xff]
    %v312 = vld [vmem:[%s1 + $0x898] sm:$0xff]
    %v313 = vld [vmem:[%s1 + $0x8a0] sm:$0xff]
    %v314 = vld [vmem:[%s1 + $0x8a8] sm:$0xff]
    %v315 = vld [vmem:[%s1 + $0x8b0] sm:$0xff]
    %v316 = vld [vmem:[%s1 + $0x8b8] sm:$0xff]
    %v317 = vld [vmem:[%s1 + $0x8c0] sm:$0xff]
    %v318 = vld [vmem:[%s1 + $0x8c8] sm:$0xff]
    %v319 = vld [vmem:[%s1 + $0x8d0] sm:$0xff]
    %v320 = vld [vmem:[%s1 + $0x8d8] sm:$0xff]
    %v321 = vld [vmem:[%s1 + $0x8e0] sm:$0xff]
    %v322 = vld [vmem:[%s1 + $0x8e8] sm:$0xff]
    %v323 = vld [vmem:[%s1 + $0x8f0] sm:$0xff]
    %v324 = vld [vmem:[%s1 + $0x8f8] sm:$0xff]
    %v325 = vld [vmem:[%s1 + $0x900] sm:$0xff]
    %v326 = vld [vmem:[%s1 + $0x908] sm:$0xff]
    %v327 = vld [vmem:[%s1 + $0x910] sm:$0xff]
    %v328 = vld [vmem:[%s1 + $0x918] sm:$0xff]
    %v329 = vld [vmem:[%s1 + $0x920] sm:$0xff]
    %v330 = vld [vmem:[%s1 + $0x928] sm:$0xff]
    %v331 = vld [vmem:[%s1 + $0x930] sm:$0xff]
    %v332 = vld [vmem:[%s1 + $0x938] sm:$0xff]
    %v333 = vld [vmem:[%s1 + $0x940] sm:$0xff]
    %v334 = vld [vmem:[%s1 + $0x948] sm:$0xff]
    %v335 = vld [vmem:[%s1 + $0x950] sm:$0xff]
    %v336 = vld [vmem:[%s1 + $0x958] sm:$0xff]
    %v337 = vld [vmem:[%s1 + $0x960] sm:$0xff]
    %v338 = vld [vmem:[%s1 + $0x968] sm:$0xff]
    %v339 = vld [vmem:[%s1 + $0x970] sm:$0xff]
    %v340 = vld [vmem:[%s1 + $0x978] sm:$0xff]
    %v341 = vld [vmem:[%s1 + $0x980] sm:$0xff]
    %v342 = vld [vmem:[%s1 + $0x988] sm:$0xff]
    %v343 = vld [vmem:[%s1 + $0x990] sm:$0xff]
    %v344 = vld [vmem:[%s1 + $0x998] sm:$0xff]
    %v345 = vld [vmem:[%s1 + $0x9a0] sm:$0xff]
    %v346 = vld [vmem:[%s1 + $0x9a8] sm:$0xff]
    %v347 = vld [vmem:[%s1 + $0x9b0] sm:$0xff]
    %v348 = vld [vmem:[%s1 + $0x9b8] sm:$0xff]
    %v349 = vld [vmem:[%s1 + $0x9c0] sm:$0xff]
    %v350 = vld [vmem:[%s1 + $0x9c8] sm:$0xff]
    %v351 = vld [vmem:[%s1 + $0x9d0] sm:$0xff]
    %v352 = vld [vmem:[%s1 + $0x9d8] sm:$0xff]
    %v353 = vld [vmem:[%s1 + $0x9e0] sm:$0xff]
    %v354 = vld [vmem:[%s1 + $0x9e8] sm:$0xff]
    %v355 = vld [vmem:[%s1 + $0x9f0] sm:$0xff]
    %v356 = vld [vmem:[%s1 + $0x9f8] sm:$0xff]
    %v357 = vld [vmem:[%s2] sm:$0xff]
    %v358 = vld [vmem:[%s2 + $0x8] sm:$0x3]
    %v359 = vld [vmem:[%s3] sm:$0xff]
    %v360 = vld [vmem:[%s3 + $0x8] sm:$0xff]
    %v361 = vld [vmem:[%s4] sm:$0xff]
    %v362 = vld [vmem:[%s4 + $0x8] sm:$0xff]
    %v363 = vld [vmem:[%s5] sm:$0xff]
    %v364 = vld [vmem:[%s5 + $0x8] sm:$0xff]
    %v365 = vld [vmem:[%s6] sm:$0xff]
    %v366 = vld [vmem:[%s6 + $0x8] sm:$0xff]
    %v367 = vld [vmem:[%s6 + $0x10] sm:$0xff]
    %v368 = vld [vmem:[%s6 + $0x18] sm:$0xff]
    %v369 = vld [vmem:[%s6 + $0x20] sm:$0xff]
    %v370 = vld [vmem:[%s6 + $0x28] sm:$0xff]
    %v371 = vld [vmem:[%s6 + $0x30] sm:$0xff]
    %v372 = vld [vmem:[%s6 + $0x38] sm:$0xff]
    %v373 = vld [vmem:[%s7] sm:$0xff]
    %v374 = vld [vmem:[%s7 + $0x8] sm:$0xff]
    %v375 = vld [vmem:[%s8] sm:$0x1]
    %v376 = vld [vmem:[%s8 + $0x1] sm:$0x1]
    %v379 = vlaneseq
    %v380 = vshrl.u32 %v379, 7
    %v381 = vsub.s32 0, %v380
    %v382 = vrot.slane %v357, %v381
    %v383 = vlaneseq
    %v384 = vshrl.u32 %v383, 7
    %v385 = vsub.s32 1, %v384
    %v386 = vrot.slane %v357, %v385
    %v387 = vlaneseq
    %v388 = vshrl.u32 %v387, 7
    %v389 = vsub.s32 2, %v388
    %v390 = vrot.slane %v357, %v389
    %v391 = vlaneseq
    %v392 = vshrl.u32 %v391, 7
    %v393 = vsub.s32 3, %v392
    %v394 = vrot.slane %v357, %v393
    %v395 = vlaneseq
    %v396 = vshrl.u32 %v395, 7
    %v397 = vsub.s32 4, %v396
    %v398 = vrot.slane %v357, %v397
    %v399 = vlaneseq
    %v400 = vshrl.u32 %v399, 7
    %v401 = vsub.s32 5, %v400
    %v402 = vrot.slane %v357, %v401
    %v403 = vlaneseq
    %v404 = vshrl.u32 %v403, 7
    %v405 = vsub.s32 6, %v404
    %v406 = vrot.slane %v357, %v405
    %v407 = vlaneseq
    %v408 = vshrl.u32 %v407, 7
    %v409 = vsub.s32 7, %v408
    %v410 = vrot.slane %v357, %v409
    %v411 = vlaneseq
    %v412 = vshrl.u32 %v411, 7
    %v413 = vsub.s32 0, %v412
    %v414 = vrot.slane %v358, %v413
    %v415 = vlaneseq
    %v416 = vshrl.u32 %v415, 7
    %v417 = vsub.s32 1, %v416
    %v418 = vrot.slane %v358, %v417
    %429 = vmatprep.subr.mxu0 %v188
    %430 = vmatpush1.msra.mxu0 %v187
    %431 = vmatprep.subr.mxu0 %v178
    %432 = vmatpush1.msra.mxu0 %v177
    %433 = vmatprep.subr.mxu0 %v168
    %434 = vmatpush1.msra.mxu0 %v167
    %435 = vmatprep.subr.mxu0 %v158
    %436 = vmatpush1.msra.mxu0 %v157
    %437 = vmatprep.subr.mxu0 %v148
    %438 = vmatpush1.msra.mxu0 %v147
    %439 = vmatprep.subr.mxu0 %v138
    %440 = vmatpush1.msra.mxu0 %v137
    %441 = vmatprep.subr.mxu0 %v128
    %442 = vmatpush1.msra.mxu0 %v127
    %443 = vmatprep.subr.mxu0 %v118
    %444 = vmatpush1.msra.mxu0 %v117
    %445 = vmatprep.subr.mxu0 %v108
    %446 = vmatpush1.msra.mxu0 %v107
    %447 = vmatprep.subr.mxu0 %v98
    %448 = vmatpush1.msra.mxu0 %v97
    %449 = vmatprep.subr.mxu0 %v88
    %450 = vmatpush1.msra.mxu0 %v87
    %451 = vmatprep.subr.mxu0 %v78
    %452 = vmatpush1.msra.mxu0 %v77
    %453 = vmatprep.subr.mxu0 %v68
    %454 = vmatpush1.msra.mxu0 %v67
    %455 = vmatprep.subr.mxu0 %v58
    %456 = vmatpush1.msra.mxu0 %v57
    %457 = vmatprep.subr.mxu0 %v48
    %458 = vmatpush1.msra.mxu0 %v47
    %459 = vmatprep.subr.mxu0 %v38
    %460 = vmatpush1.msra.mxu0 %v37
    %461 = vmatprep.subr.mxu0 %v348
    %462 = vmatpush2.msra.mxu0 %v347
    %463 = vmatprep.subr.mxu0 %v338
    %464 = vmatpush2.msra.mxu0 %v337
    %465 = vmatprep.subr.mxu0 %v328
    %466 = vmatpush2.msra.mxu0 %v327
    %467 = vmatprep.subr.mxu0 %v318
    %468 = vmatpush2.msra.mxu0 %v317
    %469 = vmatprep.subr.mxu0 %v308
    %470 = vmatpush2.msra.mxu0 %v307
    %471 = vmatprep.subr.mxu0 %v298
    %472 = vmatpush2.msra.mxu0 %v297
    %473 = vmatprep.subr.mxu0 %v288
    %474 = vmatpush2.msra.mxu0 %v287
    %475 = vmatprep.subr.mxu0 %v278
    %476 = vmatpush2.msra.mxu0 %v277
    %477 = vmatprep.subr.mxu0 %v268
    %478 = vmatpush2.msra.mxu0 %v267
    %479 = vmatprep.subr.mxu0 %v258
    %480 = vmatpush2.msra.mxu0 %v257
    %481 = vmatprep.subr.mxu0 %v248
    %482 = vmatpush2.msra.mxu0 %v247
    %483 = vmatprep.subr.mxu0 %v238
    %484 = vmatpush2.msra.mxu0 %v237
    %485 = vmatprep.subr.mxu0 %v228
    %486 = vmatpush2.msra.mxu0 %v227
    %487 = vmatprep.subr.mxu0 %v218
    %488 = vmatpush2.msra.mxu0 %v217
    %489 = vmatprep.subr.mxu0 %v208
    %490 = vmatpush2.msra.mxu0 %v207
    %491 = vmatprep.subr.mxu0 %v198
    %492 = vmatpush2.msra.mxu0 %v197
    %493 = vmatprep.mubr.f32.mxu0 %v34
    %494 = vmatmul.mubr.f32.gmra.mxu0 %v33
    %v495 = vpop.f32.mrf.mxu0
    %v496 = vadd.f32 %v382, %v495
    %v497 = vpop.f32.mrf.mxu0
    %v498 = vadd.f32 %v386, %v497
    %499 = vmatprep.mubr.f32.mxu0 %v36
    %500 = vmatmul.mubr.f32.gmra.mxu0 %v35
    %v501 = vpop.f32.mrf.mxu0
    %v502 = vadd.f32 %v382, %v501
    %v503 = vpop.f32.mrf.mxu0
    %v504 = vadd.f32 %v386, %v503
    %505 = vdwg.mxu0
    %506 = vmatprep.subr.mxu0 %v190
    %507 = vmatpush1.msra.mxu0 %v189
    %508 = vmatprep.subr.mxu0 %v180
    %509 = vmatpush1.msra.mxu0 %v179
    %510 = vmatprep.subr.mxu0 %v170
    %511 = vmatpush1.msra.mxu0 %v169
    %512 = vmatprep.subr.mxu0 %v160
    %513 = vmatpush1.msra.mxu0 %v159
    %514 = vmatprep.subr.mxu0 %v150
    %515 = vmatpush1.msra.mxu0 %v149
    %516 = vmatprep.subr.mxu0 %v140
    %517 = vmatpush1.msra.mxu0 %v139
    %518 = vmatprep.subr.mxu0 %v130
    %519 = vmatpush1.msra.mxu0 %v129
    %520 = vmatprep.subr.mxu0 %v120
    %521 = vmatpush1.msra.mxu0 %v119
    %522 = vmatprep.subr.mxu0 %v110
    %523 = vmatpush1.msra.mxu0 %v109
    %524 = vmatprep.subr.mxu0 %v100
    %525 = vmatpush1.msra.mxu0 %v99
    %526 = vmatprep.subr.mxu0 %v90
    %527 = vmatpush1.msra.mxu0 %v89
    %528 = vmatprep.subr.mxu0 %v80
    %529 = vmatpush1.msra.mxu0 %v79
    %530 = vmatprep.subr.mxu0 %v70
    %531 = vmatpush1.msra.mxu0 %v69
    %532 = vmatprep.subr.mxu0 %v60
    %533 = vmatpush1.msra.mxu0 %v59
    %534 = vmatprep.subr.mxu0 %v50
    %535 = vmatpush1.msra.mxu0 %v49
    %536 = vmatprep.subr.mxu0 %v40
    %537 = vmatpush1.msra.mxu0 %v39
    %538 = vmatprep.subr.mxu0 %v350
    %539 = vmatpush2.msra.mxu0 %v349
    %540 = vmatprep.subr.mxu0 %v340
    %541 = vmatpush2.msra.mxu0 %v339
    %542 = vmatprep.subr.mxu0 %v330
    %543 = vmatpush2.msra.mxu0 %v329
    %544 = vmatprep.subr.mxu0 %v320
    %545 = vmatpush2.msra.mxu0 %v319
    %546 = vmatprep.subr.mxu0 %v310
    %547 = vmatpush2.msra.mxu0 %v309
    %548 = vmatprep.subr.mxu0 %v300
    %549 = vmatpush2.msra.mxu0 %v299
    %550 = vmatprep.subr.mxu0 %v290
    %551 = vmatpush2.msra.mxu0 %v289
    %552 = vmatprep.subr.mxu0 %v280
    %553 = vmatpush2.msra.mxu0 %v279
    %554 = vmatprep.subr.mxu0 %v270
    %555 = vmatpush2.msra.mxu0 %v269
    %556 = vmatprep.subr.mxu0 %v260
    %557 = vmatpush2.msra.mxu0 %v259
    %558 = vmatprep.subr.mxu0 %v250
    %559 = vmatpush2.msra.mxu0 %v249
    %560 = vmatprep.subr.mxu0 %v240
    %561 = vmatpush2.msra.mxu0 %v239
    %562 = vmatprep.subr.mxu0 %v230
    %563 = vmatpush2.msra.mxu0 %v229
    %564 = vmatprep.subr.mxu0 %v220
    %565 = vmatpush2.msra.mxu0 %v219
    %566 = vmatprep.subr.mxu0 %v210
    %567 = vmatpush2.msra.mxu0 %v209
    %568 = vmatprep.subr.mxu0 %v200
    %569 = vmatpush2.msra.mxu0 %v199
    %570 = vmatprep.mubr.f32.mxu0 %v34
    %571 = vmatmul.mubr.f32.gmra.mxu0 %v33
    %v572 = vpop.f32.mrf.mxu0
    %v573 = vadd.f32 %v390, %v572
    %v574 = vpop.f32.mrf.mxu0
    %v575 = vadd.f32 %v394, %v574
    %576 = vmatprep.mubr.f32.mxu0 %v36
    %577 = vmatmul.mubr.f32.gmra.mxu0 %v35
    %v578 = vpop.f32.mrf.mxu0
    %v579 = vadd.f32 %v390, %v578
    %v580 = vpop.f32.mrf.mxu0
    %v581 = vadd.f32 %v394, %v580
    %582 = vdwg.mxu0
    %583 = vmatprep.subr.mxu0 %v192
    %584 = vmatpush1.msra.mxu0 %v191
    %585 = vmatprep.subr.mxu0 %v182
    %586 = vmatpush1.msra.mxu0 %v181
    %587 = vmatprep.subr.mxu0 %v172
    %588 = vmatpush1.msra.mxu0 %v171
    %589 = vmatprep.subr.mxu0 %v162
    %590 = vmatpush1.msra.mxu0 %v161
    %591 = vmatprep.subr.mxu0 %v152
    %592 = vmatpush1.msra.mxu0 %v151
    %593 = vmatprep.subr.mxu0 %v142
    %594 = vmatpush1.msra.mxu0 %v141
    %595 = vmatprep.subr.mxu0 %v132
    %596 = vmatpush1.msra.mxu0 %v131
    %597 = vmatprep.subr.mxu0 %v122
    %598 = vmatpush1.msra.mxu0 %v121
    %599 = vmatprep.subr.mxu0 %v112
    %600 = vmatpush1.msra.mxu0 %v111
    %601 = vmatprep.subr.mxu0 %v102
    %602 = vmatpush1.msra.mxu0 %v101
    %603 = vmatprep.subr.mxu0 %v92
    %604 = vmatpush1.msra.mxu0 %v91
    %605 = vmatprep.subr.mxu0 %v82
    %606 = vmatpush1.msra.mxu0 %v81
    %607 = vmatprep.subr.mxu0 %v72
    %608 = vmatpush1.msra.mxu0 %v71
    %609 = vmatprep.subr.mxu0 %v62
    %610 = vmatpush1.msra.mxu0 %v61
    %611 = vmatprep.subr.mxu0 %v52
    %612 = vmatpush1.msra.mxu0 %v51
    %613 = vmatprep.subr.mxu0 %v42
    %614 = vmatpush1.msra.mxu0 %v41
    %615 = vmatprep.subr.mxu0 %v352
    %616 = vmatpush2.msra.mxu0 %v351
    %617 = vmatprep.subr.mxu0 %v342
    %618 = vmatpush2.msra.mxu0 %v341
    %619 = vmatprep.subr.mxu0 %v332
    %620 = vmatpush2.msra.mxu0 %v331
    %621 = vmatprep.subr.mxu0 %v322
    %622 = vmatpush2.msra.mxu0 %v321
    %623 = vmatprep.subr.mxu0 %v312
    %624 = vmatpush2.msra.mxu0 %v311
    %625 = vmatprep.subr.mxu0 %v302
    %626 = vmatpush2.msra.mxu0 %v301
    %627 = vmatprep.subr.mxu0 %v292
    %628 = vmatpush2.msra.mxu0 %v291
    %629 = vmatprep.subr.mxu0 %v282
    %630 = vmatpush2.msra.mxu0 %v281
    %631 = vmatprep.subr.mxu0 %v272
    %632 = vmatpush2.msra.mxu0 %v271
    %633 = vmatprep.subr.mxu0 %v262
    %634 = vmatpush2.msra.mxu0 %v261
    %635 = vmatprep.subr.mxu0 %v252
    %636 = vmatpush2.msra.mxu0 %v251
    %637 = vmatprep.subr.mxu0 %v242
    %638 = vmatpush2.msra.mxu0 %v241
    %639 = vmatprep.subr.mxu0 %v232
    %640 = vmatpush2.msra.mxu0 %v231
    %641 = vmatprep.subr.mxu0 %v222
    %642 = vmatpush2.msra.mxu0 %v221
    %643 = vmatprep.subr.mxu0 %v212
    %644 = vmatpush2.msra.mxu0 %v211
    %645 = vmatprep.subr.mxu0 %v202
    %646 = vmatpush2.msra.mxu0 %v201
    %647 = vmatprep.mubr.f32.mxu0 %v34
    %648 = vmatmul.mubr.f32.gmra.mxu0 %v33
    %v649 = vpop.f32.mrf.mxu0
    %v650 = vadd.f32 %v398, %v649
    %v651 = vpop.f32.mrf.mxu0
    %v652 = vadd.f32 %v402, %v651
    %653 = vmatprep.mubr.f32.mxu0 %v36
    %654 = vmatmul.mubr.f32.gmra.mxu0 %v35
    %v655 = vpop.f32.mrf.mxu0
    %v656 = vadd.f32 %v398, %v655
    %v657 = vpop.f32.mrf.mxu0
    %v658 = vadd.f32 %v402, %v657
    %659 = vdwg.mxu0
    %660 = vmatprep.subr.mxu0 %v194
    %661 = vmatpush1.msra.mxu0 %v193
    %662 = vmatprep.subr.mxu0 %v184
    %663 = vmatpush1.msra.mxu0 %v183
    %664 = vmatprep.subr.mxu0 %v174
    %665 = vmatpush1.msra.mxu0 %v173
    %666 = vmatprep.subr.mxu0 %v164
    %667 = vmatpush1.msra.mxu0 %v163
    %668 = vmatprep.subr.mxu0 %v154
    %669 = vmatpush1.msra.mxu0 %v153
    %670 = vmatprep.subr.mxu0 %v144
    %671 = vmatpush1.msra.mxu0 %v143
    %672 = vmatprep.subr.mxu0 %v134
    %673 = vmatpush1.msra.mxu0 %v133
    %674 = vmatprep.subr.mxu0 %v124
    %675 = vmatpush1.msra.mxu0 %v123
    %676 = vmatprep.subr.mxu0 %v114
    %677 = vmatpush1.msra.mxu0 %v113
    %678 = vmatprep.subr.mxu0 %v104
    %679 = vmatpush1.msra.mxu0 %v103
    %680 = vmatprep.subr.mxu0 %v94
    %681 = vmatpush1.msra.mxu0 %v93
    %682 = vmatprep.subr.mxu0 %v84
    %683 = vmatpush1.msra.mxu0 %v83
    %684 = vmatprep.subr.mxu0 %v74
    %685 = vmatpush1.msra.mxu0 %v73
    %686 = vmatprep.subr.mxu0 %v64
    %687 = vmatpush1.msra.mxu0 %v63
    %688 = vmatprep.subr.mxu0 %v54
    %689 = vmatpush1.msra.mxu0 %v53
    %690 = vmatprep.subr.mxu0 %v44
    %691 = vmatpush1.msra.mxu0 %v43
    %692 = vmatprep.subr.mxu0 %v354
    %693 = vmatpush2.msra.mxu0 %v353
    %694 = vmatprep.subr.mxu0 %v344
    %695 = vmatpush2.msra.mxu0 %v343
    %696 = vmatprep.subr.mxu0 %v334
    %697 = vmatpush2.msra.mxu0 %v333
    %698 = vmatprep.subr.mxu0 %v324
    %699 = vmatpush2.msra.mxu0 %v323
    %700 = vmatprep.subr.mxu0 %v314
    %701 = vmatpush2.msra.mxu0 %v313
    %702 = vmatprep.subr.mxu0 %v304
    %703 = vmatpush2.msra.mxu0 %v303
    %704 = vmatprep.subr.mxu0 %v294
    %705 = vmatpush2.msra.mxu0 %v293
    %706 = vmatprep.subr.mxu0 %v284
    %707 = vmatpush2.msra.mxu0 %v283
    %708 = vmatprep.subr.mxu0 %v274
    %709 = vmatpush2.msra.mxu0 %v273
    %710 = vmatprep.subr.mxu0 %v264
    %711 = vmatpush2.msra.mxu0 %v263
    %712 = vmatprep.subr.mxu0 %v254
    %713 = vmatpush2.msra.mxu0 %v253
    %714 = vmatprep.subr.mxu0 %v244
    %715 = vmatpush2.msra.mxu0 %v243
    %716 = vmatprep.subr.mxu0 %v234
    %717 = vmatpush2.msra.mxu0 %v233
    %718 = vmatprep.subr.mxu0 %v224
    %719 = vmatpush2.msra.mxu0 %v223
    %720 = vmatprep.subr.mxu0 %v214
    %721 = vmatpush2.msra.mxu0 %v213
    %722 = vmatprep.subr.mxu0 %v204
    %723 = vmatpush2.msra.mxu0 %v203
    %724 = vmatprep.mubr.f32.mxu0 %v34
    %725 = vmatmul.mubr.f32.gmra.mxu0 %v33
    %v726 = vpop.f32.mrf.mxu0
    %v727 = vadd.f32 %v406, %v726
    %v728 = vpop.f32.mrf.mxu0
    %v729 = vadd.f32 %v410, %v728
    %730 = vmatprep.mubr.f32.mxu0 %v36
    %731 = vmatmul.mubr.f32.gmra.mxu0 %v35
    %v732 = vpop.f32.mrf.mxu0
    %v733 = vadd.f32 %v406, %v732
    %v734 = vpop.f32.mrf.mxu0
    %v735 = vadd.f32 %v410, %v734
    %736 = vdwg.mxu0
    %737 = vmatprep.subr.mxu0 %v196
    %738 = vmatpush1.msra.mxu0 %v195
    %739 = vmatprep.subr.mxu0 %v186
    %740 = vmatpush1.msra.mxu0 %v185
    %741 = vmatprep.subr.mxu0 %v176
    %742 = vmatpush1.msra.mxu0 %v175
    %743 = vmatprep.subr.mxu0 %v166
    %744 = vmatpush1.msra.mxu0 %v165
    %745 = vmatprep.subr.mxu0 %v156
    %746 = vmatpush1.msra.mxu0 %v155
    %747 = vmatprep.subr.mxu0 %v146
    %748 = vmatpush1.msra.mxu0 %v145
    %749 = vmatprep.subr.mxu0 %v136
    %750 = vmatpush1.msra.mxu0 %v135
    %751 = vmatprep.subr.mxu0 %v126
    %752 = vmatpush1.msra.mxu0 %v125
    %753 = vmatprep.subr.mxu0 %v116
    %754 = vmatpush1.msra.mxu0 %v115
    %755 = vmatprep.subr.mxu0 %v106
    %756 = vmatpush1.msra.mxu0 %v105
    %757 = vmatprep.subr.mxu0 %v96
    %758 = vmatpush1.msra.mxu0 %v95
    %759 = vmatprep.subr.mxu0 %v86
    %760 = vmatpush1.msra.mxu0 %v85
    %761 = vmatprep.subr.mxu0 %v76
    %762 = vmatpush1.msra.mxu0 %v75
    %763 = vmatprep.subr.mxu0 %v66
    %764 = vmatpush1.msra.mxu0 %v65
    %765 = vmatprep.subr.mxu0 %v56
    %766 = vmatpush1.msra.mxu0 %v55
    %767 = vmatprep.subr.mxu0 %v46
    %768 = vmatpush1.msra.mxu0 %v45
    %769 = vmatprep.subr.mxu0 %v356
    %770 = vmatpush2.msra.mxu0 %v355
    %771 = vmatprep.subr.mxu0 %v346
    %772 = vmatpush2.msra.mxu0 %v345
    %773 = vmatprep.subr.mxu0 %v336
    %774 = vmatpush2.msra.mxu0 %v335
    %775 = vmatprep.subr.mxu0 %v326
    %776 = vmatpush2.msra.mxu0 %v325
    %777 = vmatprep.subr.mxu0 %v316
    %778 = vmatpush2.msra.mxu0 %v315
    %779 = vmatprep.subr.mxu0 %v306
    %780 = vmatpush2.msra.mxu0 %v305
    %781 = vmatprep.subr.mxu0 %v296
    %782 = vmatpush2.msra.mxu0 %v295
    %783 = vmatprep.subr.mxu0 %v286
    %784 = vmatpush2.msra.mxu0 %v285
    %785 = vmatprep.subr.mxu0 %v276
    %786 = vmatpush2.msra.mxu0 %v275
    %787 = vmatprep.subr.mxu0 %v266
    %788 = vmatpush2.msra.mxu0 %v265
    %789 = vmatprep.subr.mxu0 %v256
    %790 = vmatpush2.msra.mxu0 %v255
    %791 = vmatprep.subr.mxu0 %v246
    %792 = vmatpush2.msra.mxu0 %v245
    %793 = vmatprep.subr.mxu0 %v236
    %794 = vmatpush2.msra.mxu0 %v235
    %795 = vmatprep.subr.mxu0 %v226
    %796 = vmatpush2.msra.mxu0 %v225
    %797 = vmatprep.subr.mxu0 %v216
    %798 = vmatpush2.msra.mxu0 %v215
    %799 = vmatprep.subr.mxu0 %v206
    %800 = vmatpush2.msra.mxu0 %v205
    %801 = vmatprep.mubr.f32.mxu0 %v34
    %802 = vmatmul.mubr.f32.gmra.mxu0 %v33
    %v803 = vpop.f32.mrf.mxu0
    %v804 = vadd.f32 %v414, %v803
    %v805 = vpop.f32.mrf.mxu0
    %v806 = vadd.f32 %v418, %v805
    %807 = vmatprep.mubr.f32.mxu0 %v36
    %808 = vmatmul.mubr.f32.gmra.mxu0 %v35
    %v809 = vpop.f32.mrf.mxu0
    %v810 = vadd.f32 %v414, %v809
    %v811 = vpop.f32.mrf.mxu0
    %v812 = vadd.f32 %v418, %v811
    %813 = vdwg.mxu0
    %v814 = vmul.f32 %v496, %v359
    %v815 = vmul.f32 %v498, %v360
    %v816 = vmul.f32 %v502, %v359
    %v817 = vmul.f32 %v504, %v360
    %v818 = vmul.f32 %v727, %v361
    %v819 = vmul.f32 %v729, %v362
    %v820 = vmul.f32 %v733, %v361
    %v821 = vmul.f32 %v735, %v362
    %v822 = vadd.f32 %v814, %v818
    %v823 = vadd.f32 %v815, %v819
    %v824 = vadd.f32 %v816, %v820
    %v825 = vadd.f32 %v817, %v821
    %v826 = vmul.f32 %v573, %v359
    %v827 = vmul.f32 %v575, %v360
    %v828 = vmul.f32 %v579, %v359
    %v829 = vmul.f32 %v581, %v360
    %v830 = vmul.f32 %v804, %v361
    %v831 = vmul.f32 %v806, %v362
    %v832 = vmul.f32 %v810, %v361
    %v833 = vmul.f32 %v812, %v362
    %v834 = vadd.f32 %v826, %v830
    %v835 = vadd.f32 %v827, %v831
    %v836 = vadd.f32 %v828, %v832
    %v837 = vadd.f32 %v829, %v833
    %v838 = vmul.f32 %v650, %v650
    %v839 = vmul.f32 %v652, %v652
    %v840 = vmul.f32 %v656, %v656
    %v841 = vmul.f32 %v658, %v658
    %v842 = vmul.f32 %v838, %v650
    %v843 = vmul.f32 %v839, %v652
    %v844 = vmul.f32 %v840, %v656
    %v845 = vmul.f32 %v841, %v658
    %v850 = vcombine.low %v834, %v835
    %v851 = vcombine.high %v834, %v835
    %v853 = vunpack.c.l.s4 1966171168
    %v854 = vunpack.c.0.s8 %v853
    %v855 = vlaneseq
    %v856 = vshrl.u32 %v855, 7
    %v857 = vsub.s32 %v854, %v856
    %v858 = vrot.slane %v850, %v857
    %v860 = vunpack.c.l.s4 1966171168
    %v861 = vunpack.c.0.s8 %v860
    %v862 = vlaneseq
    %v863 = vshrl.u32 %v862, 7
    %v864 = vsub.s32 %v861, %v863
    %v865 = vrot.slane %v851, %v864
    %v866 = vcombine.high %v858, %v858
    %v867 = vcombine.high %v865, %v865
    %v869 = vunpack.c.l.s4 1966171168
    %v870 = vunpack.c.0.s8 %v869
    %v871 = vlaneseq
    %v872 = vshrl.u32 %v871, 7
    %v873 = vsub.s32 %v870, %v872
    %v874 = vrot.slane %v858, %v873
    %v876 = vunpack.c.l.s4 1966171168
    %v877 = vunpack.c.0.s8 %v876
    %v878 = vlaneseq
    %v879 = vshrl.u32 %v878, 7
    %v880 = vsub.s32 %v877, %v879
    %v881 = vrot.slane %v865, %v880
    %v883 = vunpack.c.l.s4 1966171168
    %v884 = vunpack.c.0.s8 %v883
    %v885 = vlaneseq
    %v886 = vshrl.u32 %v885, 7
    %v887 = vsub.s32 %v884, %v886
    %v888 = vrot.slane %v866, %v887
    %v890 = vunpack.c.l.s4 1966171168
    %v891 = vunpack.c.0.s8 %v890
    %v892 = vlaneseq
    %v893 = vshrl.u32 %v892, 7
    %v894 = vsub.s32 %v891, %v893
    %v895 = vrot.slane %v867, %v894
    %v896 = vcombine.high %v874, %v874
    %v897 = vcombine.high %v881, %v881
    %v898 = vcombine.high %v888, %v888
    %v899 = vcombine.high %v895, %v895
    %v900 = vcombine.low %v836, %v837
    %v901 = vcombine.high %v836, %v837
    %v903 = vunpack.c.l.s4 1966171168
    %v904 = vunpack.c.0.s8 %v903
    %v905 = vlaneseq
    %v906 = vshrl.u32 %v905, 7
    %v907 = vsub.s32 %v904, %v906
    %v908 = vrot.slane %v900, %v907
    %v910 = vunpack.c.l.s4 1966171168
    %v911 = vunpack.c.0.s8 %v910
    %v912 = vlaneseq
    %v913 = vshrl.u32 %v912, 7
    %v914 = vsub.s32 %v911, %v913
    %v915 = vrot.slane %v901, %v914
    %v916 = vcombine.high %v908, %v908
    %v917 = vcombine.high %v915, %v915
    %v919 = vunpack.c.l.s4 1966171168
    %v920 = vunpack.c.0.s8 %v919
    %v921 = vlaneseq
    %v922 = vshrl.u32 %v921, 7
    %v923 = vsub.s32 %v920, %v922
    %v924 = vrot.slane %v908, %v923
    %v926 = vunpack.c.l.s4 1966171168
    %v927 = vunpack.c.0.s8 %v926
    %v928 = vlaneseq
    %v929 = vshrl.u32 %v928, 7
    %v930 = vsub.s32 %v927, %v929
    %v931 = vrot.slane %v915, %v930
    %v933 = vunpack.c.l.s4 1966171168
    %v934 = vunpack.c.0.s8 %v933
    %v935 = vlaneseq
    %v936 = vshrl.u32 %v935, 7
    %v937 = vsub.s32 %v934, %v936
    %v938 = vrot.slane %v916, %v937
    %v940 = vunpack.c.l.s4 1966171168
    %v941 = vunpack.c.0.s8 %v940
    %v942 = vlaneseq
    %v943 = vshrl.u32 %v942, 7
    %v944 = vsub.s32 %v941, %v943
    %v945 = vrot.slane %v917, %v944
    %v946 = vcombine.high %v924, %v924
    %v947 = vcombine.high %v931, %v931
    %v948 = vcombine.high %v938, %v938
    %v949 = vcombine.high %v945, %v945
    %v950 = vlaneseq
    %v951 = vshrl.u32 %v950, 7
    %v952 = vsub.s32 0, %v951
    %v953 = vrot.slane %v874, %v952
    %v954 = vlaneseq
    %v955 = vshrl.u32 %v954, 7
    %v956 = vsub.s32 1, %v955
    %v957 = vrot.slane %v874, %v956
    %v958 = vlaneseq
    %v959 = vshrl.u32 %v958, 7
    %v960 = vsub.s32 0, %v959
    %v961 = vrot.slane %v888, %v960
    %v962 = vlaneseq
    %v963 = vshrl.u32 %v962, 7
    %v964 = vsub.s32 1, %v963
    %v965 = vrot.slane %v888, %v964
    %v966 = vlaneseq
    %v967 = vshrl.u32 %v966, 7
    %v968 = vsub.s32 0, %v967
    %v969 = vrot.slane %v896, %v968
    %v970 = vlaneseq
    %v971 = vshrl.u32 %v970, 7
    %v972 = vsub.s32 1, %v971
    %v973 = vrot.slane %v896, %v972
    %v974 = vlaneseq
    %v975 = vshrl.u32 %v974, 7
    %v976 = vsub.s32 0, %v975
    %v977 = vrot.slane %v898, %v976
    %v978 = vlaneseq
    %v979 = vshrl.u32 %v978, 7
    %v980 = vsub.s32 1, %v979
    %v981 = vrot.slane %v898, %v980
    %v982 = vlaneseq
    %v983 = vshrl.u32 %v982, 7
    %v984 = vsub.s32 0, %v983
    %v985 = vrot.slane %v881, %v984
    %v986 = vlaneseq
    %v987 = vshrl.u32 %v986, 7
    %v988 = vsub.s32 1, %v987
    %v989 = vrot.slane %v881, %v988
    %v990 = vlaneseq
    %v991 = vshrl.u32 %v990, 7
    %v992 = vsub.s32 0, %v991
    %v993 = vrot.slane %v895, %v992
    %v994 = vlaneseq
    %v995 = vshrl.u32 %v994, 7
    %v996 = vsub.s32 1, %v995
    %v997 = vrot.slane %v895, %v996
    %v998 = vlaneseq
    %v999 = vshrl.u32 %v998, 7
    %v1000 = vsub.s32 0, %v999
    %v1001 = vrot.slane %v897, %v1000
    %v1002 = vlaneseq
    %v1003 = vshrl.u32 %v1002, 7
    %v1004 = vsub.s32 1, %v1003
    %v1005 = vrot.slane %v897, %v1004
    %v1006 = vlaneseq
    %v1007 = vshrl.u32 %v1006, 7
    %v1008 = vsub.s32 0, %v1007
    %v1009 = vrot.slane %v899, %v1008
    %v1010 = vlaneseq
    %v1011 = vshrl.u32 %v1010, 7
    %v1012 = vsub.s32 1, %v1011
    %v1013 = vrot.slane %v899, %v1012
    %v1014 = vlaneseq
    %v1015 = vshrl.u32 %v1014, 7
    %v1016 = vsub.s32 0, %v1015
    %v1017 = vrot.slane %v924, %v1016
    %v1018 = vlaneseq
    %v1019 = vshrl.u32 %v1018, 7
    %v1020 = vsub.s32 1, %v1019
    %v1021 = vrot.slane %v924, %v1020
    %v1022 = vlaneseq
    %v1023 = vshrl.u32 %v1022, 7
    %v1024 = vsub.s32 0, %v1023
    %v1025 = vrot.slane %v938, %v1024
    %v1026 = vlaneseq
    %v1027 = vshrl.u32 %v1026, 7
    %v1028 = vsub.s32 1, %v1027
    %v1029 = vrot.slane %v938, %v1028
    %v1030 = vlaneseq
    %v1031 = vshrl.u32 %v1030, 7
    %v1032 = vsub.s32 0, %v1031
    %v1033 = vrot.slane %v946, %v1032
    %v1034 = vlaneseq
    %v1035 = vshrl.u32 %v1034, 7
    %v1036 = vsub.s32 1, %v1035
    %v1037 = vrot.slane %v946, %v1036
    %v1038 = vlaneseq
    %v1039 = vshrl.u32 %v1038, 7
    %v1040 = vsub.s32 0, %v1039
    %v1041 = vrot.slane %v948, %v1040
    %v1042 = vlaneseq
    %v1043 = vshrl.u32 %v1042, 7
    %v1044 = vsub.s32 1, %v1043
    %v1045 = vrot.slane %v948, %v1044
    %v1046 = vlaneseq
    %v1047 = vshrl.u32 %v1046, 7
    %v1048 = vsub.s32 0, %v1047
    %v1049 = vrot.slane %v931, %v1048
    %v1050 = vlaneseq
    %v1051 = vshrl.u32 %v1050, 7
    %v1052 = vsub.s32 1, %v1051
    %v1053 = vrot.slane %v931, %v1052
    %v1054 = vlaneseq
    %v1055 = vshrl.u32 %v1054, 7
    %v1056 = vsub.s32 0, %v1055
    %v1057 = vrot.slane %v945, %v1056
    %v1058 = vlaneseq
    %v1059 = vshrl.u32 %v1058, 7
    %v1060 = vsub.s32 1, %v1059
    %v1061 = vrot.slane %v945, %v1060
    %v1062 = vlaneseq
    %v1063 = vshrl.u32 %v1062, 7
    %v1064 = vsub.s32 0, %v1063
    %v1065 = vrot.slane %v947, %v1064
    %v1066 = vlaneseq
    %v1067 = vshrl.u32 %v1066, 7
    %v1068 = vsub.s32 1, %v1067
    %v1069 = vrot.slane %v947, %v1068
    %v1070 = vlaneseq
    %v1071 = vshrl.u32 %v1070, 7
    %v1072 = vsub.s32 0, %v1071
    %v1073 = vrot.slane %v949, %v1072
    %v1074 = vlaneseq
    %v1075 = vshrl.u32 %v1074, 7
    %v1076 = vsub.s32 1, %v1075
    %v1077 = vrot.slane %v949, %v1076
    %v1110 = vmul.f32 %v953, %v363
    %v1111 = vmul.f32 %v957, %v364
    %v1112 = vmul.f32 %v961, %v363
    %v1113 = vmul.f32 %v965, %v364
    %v1114 = vmul.f32 %v969, %v363
    %v1115 = vmul.f32 %v973, %v364
    %v1116 = vmul.f32 %v977, %v363
    %v1117 = vmul.f32 %v981, %v364
    %v1118 = vmul.f32 %v985, %v363
    %v1119 = vmul.f32 %v989, %v364
    %v1120 = vmul.f32 %v993, %v363
    %v1121 = vmul.f32 %v997, %v364
    %v1122 = vmul.f32 %v1001, %v363
    %v1123 = vmul.f32 %v1005, %v364
    %v1124 = vmul.f32 %v1009, %v363
    %v1125 = vmul.f32 %v1013, %v364
    %v1126 = vmul.f32 %v1017, %v363
    %v1127 = vmul.f32 %v1021, %v364
    %v1128 = vmul.f32 %v1025, %v363
    %v1129 = vmul.f32 %v1029, %v364
    %v1130 = vmul.f32 %v1033, %v363
    %v1131 = vmul.f32 %v1037, %v364
    %v1132 = vmul.f32 %v1041, %v363
    %v1133 = vmul.f32 %v1045, %v364
    %v1134 = vmul.f32 %v1049, %v363
    %v1135 = vmul.f32 %v1053, %v364
    %v1136 = vmul.f32 %v1057, %v363
    %v1137 = vmul.f32 %v1061, %v364
    %v1138 = vmul.f32 %v1065, %v363
    %v1139 = vmul.f32 %v1069, %v364
    %v1140 = vmul.f32 %v1073, %v363
    %v1141 = vmul.f32 %v1077, %v364
    %v1146 = vcombine.low %v842, %v843
    %v1147 = vcombine.high %v842, %v843
    %v1149 = vunpack.c.l.s4 1966171168
    %v1150 = vunpack.c.0.s8 %v1149
    %v1151 = vlaneseq
    %v1152 = vshrl.u32 %v1151, 7
    %v1153 = vsub.s32 %v1150, %v1152
    %v1154 = vrot.slane %v1146, %v1153
    %v1156 = vunpack.c.l.s4 1966171168
    %v1157 = vunpack.c.0.s8 %v1156
    %v1158 = vlaneseq
    %v1159 = vshrl.u32 %v1158, 7
    %v1160 = vsub.s32 %v1157, %v1159
    %v1161 = vrot.slane %v1147, %v1160
    %v1162 = vcombine.high %v1154, %v1154
    %v1163 = vcombine.high %v1161, %v1161
    %v1165 = vunpack.c.l.s4 1966171168
    %v1166 = vunpack.c.0.s8 %v1165
    %v1167 = vlaneseq
    %v1168 = vshrl.u32 %v1167, 7
    %v1169 = vsub.s32 %v1166, %v1168
    %v1170 = vrot.slane %v1154, %v1169
    %v1172 = vunpack.c.l.s4 1966171168
    %v1173 = vunpack.c.0.s8 %v1172
    %v1174 = vlaneseq
    %v1175 = vshrl.u32 %v1174, 7
    %v1176 = vsub.s32 %v1173, %v1175
    %v1177 = vrot.slane %v1161, %v1176
    %v1179 = vunpack.c.l.s4 1966171168
    %v1180 = vunpack.c.0.s8 %v1179
    %v1181 = vlaneseq
    %v1182 = vshrl.u32 %v1181, 7
    %v1183 = vsub.s32 %v1180, %v1182
    %v1184 = vrot.slane %v1162, %v1183
    %v1186 = vunpack.c.l.s4 1966171168
    %v1187 = vunpack.c.0.s8 %v1186
    %v1188 = vlaneseq
    %v1189 = vshrl.u32 %v1188, 7
    %v1190 = vsub.s32 %v1187, %v1189
    %v1191 = vrot.slane %v1163, %v1190
    %v1192 = vcombine.high %v1170, %v1170
    %v1193 = vcombine.high %v1177, %v1177
    %v1194 = vcombine.high %v1184, %v1184
    %v1195 = vcombine.high %v1191, %v1191
    %v1196 = vcombine.low %v844, %v845
    %v1197 = vcombine.high %v844, %v845
    %v1199 = vunpack.c.l.s4 1966171168
    %v1200 = vunpack.c.0.s8 %v1199
    %v1201 = vlaneseq
    %v1202 = vshrl.u32 %v1201, 7
    %v1203 = vsub.s32 %v1200, %v1202
    %v1204 = vrot.slane %v1196, %v1203
    %v1206 = vunpack.c.l.s4 1966171168
    %v1207 = vunpack.c.0.s8 %v1206
    %v1208 = vlaneseq
    %v1209 = vshrl.u32 %v1208, 7
    %v1210 = vsub.s32 %v1207, %v1209
    %v1211 = vrot.slane %v1197, %v1210
    %v1212 = vcombine.high %v1204, %v1204
    %v1213 = vcombine.high %v1211, %v1211
    %v1215 = vunpack.c.l.s4 1966171168
    %v1216 = vunpack.c.0.s8 %v1215
    %v1217 = vlaneseq
    %v1218 = vshrl.u32 %v1217, 7
    %v1219 = vsub.s32 %v1216, %v1218
    %v1220 = vrot.slane %v1204, %v1219
    %v1222 = vunpack.c.l.s4 1966171168
    %v1223 = vunpack.c.0.s8 %v1222
    %v1224 = vlaneseq
    %v1225 = vshrl.u32 %v1224, 7
    %v1226 = vsub.s32 %v1223, %v1225
    %v1227 = vrot.slane %v1211, %v1226
    %v1229 = vunpack.c.l.s4 1966171168
    %v1230 = vunpack.c.0.s8 %v1229
    %v1231 = vlaneseq
    %v1232 = vshrl.u32 %v1231, 7
    %v1233 = vsub.s32 %v1230, %v1232
    %v1234 = vrot.slane %v1212, %v1233
    %v1236 = vunpack.c.l.s4 1966171168
    %v1237 = vunpack.c.0.s8 %v1236
    %v1238 = vlaneseq
    %v1239 = vshrl.u32 %v1238, 7
    %v1240 = vsub.s32 %v1237, %v1239
    %v1241 = vrot.slane %v1213, %v1240
    %v1242 = vcombine.high %v1220, %v1220
    %v1243 = vcombine.high %v1227, %v1227
    %v1244 = vcombine.high %v1234, %v1234
    %v1245 = vcombine.high %v1241, %v1241
    %v1246 = vlaneseq
    %v1247 = vshrl.u32 %v1246, 7
    %v1248 = vsub.s32 0, %v1247
    %v1249 = vrot.slane %v1170, %v1248
    %v1250 = vlaneseq
    %v1251 = vshrl.u32 %v1250, 7
    %v1252 = vsub.s32 1, %v1251
    %v1253 = vrot.slane %v1170, %v1252
    %v1254 = vlaneseq
    %v1255 = vshrl.u32 %v1254, 7
    %v1256 = vsub.s32 0, %v1255
    %v1257 = vrot.slane %v1184, %v1256
    %v1258 = vlaneseq
    %v1259 = vshrl.u32 %v1258, 7
    %v1260 = vsub.s32 1, %v1259
    %v1261 = vrot.slane %v1184, %v1260
    %v1262 = vlaneseq
    %v1263 = vshrl.u32 %v1262, 7
    %v1264 = vsub.s32 0, %v1263
    %v1265 = vrot.slane %v1192, %v1264
    %v1266 = vlaneseq
    %v1267 = vshrl.u32 %v1266, 7
    %v1268 = vsub.s32 1, %v1267
    %v1269 = vrot.slane %v1192, %v1268
    %v1270 = vlaneseq
    %v1271 = vshrl.u32 %v1270, 7
    %v1272 = vsub.s32 0, %v1271
    %v1273 = vrot.slane %v1194, %v1272
    %v1274 = vlaneseq
    %v1275 = vshrl.u32 %v1274, 7
    %v1276 = vsub.s32 1, %v1275
    %v1277 = vrot.slane %v1194, %v1276
    %v1278 = vlaneseq
    %v1279 = vshrl.u32 %v1278, 7
    %v1280 = vsub.s32 0, %v1279
    %v1281 = vrot.slane %v1177, %v1280
    %v1282 = vlaneseq
    %v1283 = vshrl.u32 %v1282, 7
    %v1284 = vsub.s32 1, %v1283
    %v1285 = vrot.slane %v1177, %v1284
    %v1286 = vlaneseq
    %v1287 = vshrl.u32 %v1286, 7
    %v1288 = vsub.s32 0, %v1287
    %v1289 = vrot.slane %v1191, %v1288
    %v1290 = vlaneseq
    %v1291 = vshrl.u32 %v1290, 7
    %v1292 = vsub.s32 1, %v1291
    %v1293 = vrot.slane %v1191, %v1292
    %v1294 = vlaneseq
    %v1295 = vshrl.u32 %v1294, 7
    %v1296 = vsub.s32 0, %v1295
    %v1297 = vrot.slane %v1193, %v1296
    %v1298 = vlaneseq
    %v1299 = vshrl.u32 %v1298, 7
    %v1300 = vsub.s32 1, %v1299
    %v1301 = vrot.slane %v1193, %v1300
    %v1302 = vlaneseq
    %v1303 = vshrl.u32 %v1302, 7
    %v1304 = vsub.s32 0, %v1303
    %v1305 = vrot.slane %v1195, %v1304
    %v1306 = vlaneseq
    %v1307 = vshrl.u32 %v1306, 7
    %v1308 = vsub.s32 1, %v1307
    %v1309 = vrot.slane %v1195, %v1308
    %v1310 = vlaneseq
    %v1311 = vshrl.u32 %v1310, 7
    %v1312 = vsub.s32 0, %v1311
    %v1313 = vrot.slane %v1220, %v1312
    %v1314 = vlaneseq
    %v1315 = vshrl.u32 %v1314, 7
    %v1316 = vsub.s32 1, %v1315
    %v1317 = vrot.slane %v1220, %v1316
    %v1318 = vlaneseq
    %v1319 = vshrl.u32 %v1318, 7
    %v1320 = vsub.s32 0, %v1319
    %v1321 = vrot.slane %v1234, %v1320
    %v1322 = vlaneseq
    %v1323 = vshrl.u32 %v1322, 7
    %v1324 = vsub.s32 1, %v1323
    %v1325 = vrot.slane %v1234, %v1324
    %v1326 = vlaneseq
    %v1327 = vshrl.u32 %v1326, 7
    %v1328 = vsub.s32 0, %v1327
    %v1329 = vrot.slane %v1242, %v1328
    %v1330 = vlaneseq
    %v1331 = vshrl.u32 %v1330, 7
    %v1332 = vsub.s32 1, %v1331
    %v1333 = vrot.slane %v1242, %v1332
    %v1334 = vlaneseq
    %v1335 = vshrl.u32 %v1334, 7
    %v1336 = vsub.s32 0, %v1335
    %v1337 = vrot.slane %v1244, %v1336
    %v1338 = vlaneseq
    %v1339 = vshrl.u32 %v1338, 7
    %v1340 = vsub.s32 1, %v1339
    %v1341 = vrot.slane %v1244, %v1340
    %v1342 = vlaneseq
    %v1343 = vshrl.u32 %v1342, 7
    %v1344 = vsub.s32 0, %v1343
    %v1345 = vrot.slane %v1227, %v1344
    %v1346 = vlaneseq
    %v1347 = vshrl.u32 %v1346, 7
    %v1348 = vsub.s32 1, %v1347
    %v1349 = vrot.slane %v1227, %v1348
    %v1350 = vlaneseq
    %v1351 = vshrl.u32 %v1350, 7
    %v1352 = vsub.s32 0, %v1351
    %v1353 = vrot.slane %v1241, %v1352
    %v1354 = vlaneseq
    %v1355 = vshrl.u32 %v1354, 7
    %v1356 = vsub.s32 1, %v1355
    %v1357 = vrot.slane %v1241, %v1356
    %v1358 = vlaneseq
    %v1359 = vshrl.u32 %v1358, 7
    %v1360 = vsub.s32 0, %v1359
    %v1361 = vrot.slane %v1243, %v1360
    %v1362 = vlaneseq
    %v1363 = vshrl.u32 %v1362, 7
    %v1364 = vsub.s32 1, %v1363
    %v1365 = vrot.slane %v1243, %v1364
    %v1366 = vlaneseq
    %v1367 = vshrl.u32 %v1366, 7
    %v1368 = vsub.s32 0, %v1367
    %v1369 = vrot.slane %v1245, %v1368
    %v1370 = vlaneseq
    %v1371 = vshrl.u32 %v1370, 7
    %v1372 = vsub.s32 1, %v1371
    %v1373 = vrot.slane %v1245, %v1372
    %v1406 = vmul.f32 %v1249, %v363
    %v1407 = vmul.f32 %v1253, %v364
    %v1408 = vmul.f32 %v1257, %v363
    %v1409 = vmul.f32 %v1261, %v364
    %v1410 = vmul.f32 %v1265, %v363
    %v1411 = vmul.f32 %v1269, %v364
    %v1412 = vmul.f32 %v1273, %v363
    %v1413 = vmul.f32 %v1277, %v364
    %v1414 = vmul.f32 %v1281, %v363
    %v1415 = vmul.f32 %v1285, %v364
    %v1416 = vmul.f32 %v1289, %v363
    %v1417 = vmul.f32 %v1293, %v364
    %v1418 = vmul.f32 %v1297, %v363
    %v1419 = vmul.f32 %v1301, %v364
    %v1420 = vmul.f32 %v1305, %v363
    %v1421 = vmul.f32 %v1309, %v364
    %v1422 = vmul.f32 %v1313, %v363
    %v1423 = vmul.f32 %v1317, %v364
    %v1424 = vmul.f32 %v1321, %v363
    %v1425 = vmul.f32 %v1325, %v364
    %v1426 = vmul.f32 %v1329, %v363
    %v1427 = vmul.f32 %v1333, %v364
    %v1428 = vmul.f32 %v1337, %v363
    %v1429 = vmul.f32 %v1341, %v364
    %v1430 = vmul.f32 %v1345, %v363
    %v1431 = vmul.f32 %v1349, %v364
    %v1432 = vmul.f32 %v1353, %v363
    %v1433 = vmul.f32 %v1357, %v364
    %v1434 = vmul.f32 %v1361, %v363
    %v1435 = vmul.f32 %v1365, %v364
    %v1436 = vmul.f32 %v1369, %v363
    %v1437 = vmul.f32 %v1373, %v364
    %v1438 = vand.u32 2147483647, %v1406
    %v1439 = vand.u32 2147483647, %v1407
    %v1440 = vand.u32 2147483647, %v1408
    %v1441 = vand.u32 2147483647, %v1409
    %v1442 = vand.u32 2147483647, %v1410
    %v1443 = vand.u32 2147483647, %v1411
    %v1444 = vand.u32 2147483647, %v1412
    %v1445 = vand.u32 2147483647, %v1413
    %v1446 = vand.u32 2147483647, %v1414
    %v1447 = vand.u32 2147483647, %v1415
    %v1448 = vand.u32 2147483647, %v1416
    %v1449 = vand.u32 2147483647, %v1417
    %v1450 = vand.u32 2147483647, %v1418
    %v1451 = vand.u32 2147483647, %v1419
    %v1452 = vand.u32 2147483647, %v1420
    %v1453 = vand.u32 2147483647, %v1421
    %v1454 = vand.u32 2147483647, %v1422
    %v1455 = vand.u32 2147483647, %v1423
    %v1456 = vand.u32 2147483647, %v1424
    %v1457 = vand.u32 2147483647, %v1425
    %v1458 = vand.u32 2147483647, %v1426
    %v1459 = vand.u32 2147483647, %v1427
    %v1460 = vand.u32 2147483647, %v1428
    %v1461 = vand.u32 2147483647, %v1429
    %v1462 = vand.u32 2147483647, %v1430
    %v1463 = vand.u32 2147483647, %v1431
    %v1464 = vand.u32 2147483647, %v1432
    %v1465 = vand.u32 2147483647, %v1433
    %v1466 = vand.u32 2147483647, %v1434
    %v1467 = vand.u32 2147483647, %v1435
    %v1468 = vand.u32 2147483647, %v1436
    %v1469 = vand.u32 2147483647, %v1437
    %v1470 = vmax.f32 %v1438, %v1439
    %1471 = vmax.xlane.f32.xlu0 %v1470
    %v1472 = vpop.xlane.xlu0 %1471
    %v1473 = vmax.f32 %v1440, %v1441
    %1474 = vmax.xlane.f32.xlu0 %v1473
    %v1475 = vpop.xlane.xlu0 %1474
    %v1476 = vmax.f32 %v1442, %v1443
    %1477 = vmax.xlane.f32.xlu0 %v1476
    %v1478 = vpop.xlane.xlu0 %1477
    %v1479 = vmax.f32 %v1444, %v1445
    %1480 = vmax.xlane.f32.xlu0 %v1479
    %v1481 = vpop.xlane.xlu0 %1480
    %v1482 = vmax.f32 %v1446, %v1447
    %1483 = vmax.xlane.f32.xlu0 %v1482
    %v1484 = vpop.xlane.xlu0 %1483
    %v1485 = vmax.f32 %v1448, %v1449
    %1486 = vmax.xlane.f32.xlu0 %v1485
    %v1487 = vpop.xlane.xlu0 %1486
    %v1488 = vmax.f32 %v1450, %v1451
    %1489 = vmax.xlane.f32.xlu0 %v1488
    %v1490 = vpop.xlane.xlu0 %1489
    %v1491 = vmax.f32 %v1452, %v1453
    %1492 = vmax.xlane.f32.xlu0 %v1491
    %v1493 = vpop.xlane.xlu0 %1492
    %v1494 = vmax.f32 %v1454, %v1455
    %1495 = vmax.xlane.f32.xlu0 %v1494
    %v1496 = vpop.xlane.xlu0 %1495
    %v1497 = vmax.f32 %v1456, %v1457
    %1498 = vmax.xlane.f32.xlu0 %v1497
    %v1499 = vpop.xlane.xlu0 %1498
    %v1500 = vmax.f32 %v1458, %v1459
    %1501 = vmax.xlane.f32.xlu0 %v1500
    %v1502 = vpop.xlane.xlu0 %1501
    %v1503 = vmax.f32 %v1460, %v1461
    %1504 = vmax.xlane.f32.xlu0 %v1503
    %v1505 = vpop.xlane.xlu0 %1504
    %v1506 = vmax.f32 %v1462, %v1463
    %1507 = vmax.xlane.f32.xlu0 %v1506
    %v1508 = vpop.xlane.xlu0 %1507
    %v1509 = vmax.f32 %v1464, %v1465
    %1510 = vmax.xlane.f32.xlu0 %v1509
    %v1511 = vpop.xlane.xlu0 %1510
    %v1512 = vmax.f32 %v1466, %v1467
    %1513 = vmax.xlane.f32.xlu0 %v1512
    %v1514 = vpop.xlane.xlu0 %1513
    %v1515 = vmax.f32 %v1468, %v1469
    %1516 = vmax.xlane.f32.xlu0 %v1515
    %v1517 = vpop.xlane.xlu0 %1516
    %v1518 = vmax.f32 %v1472, 1e-38
    %v1519 = vmax.f32 %v1475, 1e-38
    %v1520 = vmax.f32 %v1478, 1e-38
    %v1521 = vmax.f32 %v1481, 1e-38
    %v1522 = vmax.f32 %v1484, 1e-38
    %v1523 = vmax.f32 %v1487, 1e-38
    %v1524 = vmax.f32 %v1490, 1e-38
    %v1525 = vmax.f32 %v1493, 1e-38
    %v1526 = vmax.f32 %v1496, 1e-38
    %v1527 = vmax.f32 %v1499, 1e-38
    %v1528 = vmax.f32 %v1502, 1e-38
    %v1529 = vmax.f32 %v1505, 1e-38
    %v1530 = vmax.f32 %v1508, 1e-38
    %v1531 = vmax.f32 %v1511, 1e-38
    %v1532 = vmax.f32 %v1514, 1e-38
    %v1533 = vmax.f32 %v1517, 1e-38
    %v1534 = vrcp.pop %v1518
    %v1535 = vrcp.pop %v1519
    %v1536 = vrcp.pop %v1520
    %v1537 = vrcp.pop %v1521
    %v1538 = vrcp.pop %v1522
    %v1539 = vrcp.pop %v1523
    %v1540 = vrcp.pop %v1524
    %v1541 = vrcp.pop %v1525
    %v1542 = vrcp.pop %v1526
    %v1543 = vrcp.pop %v1527
    %v1544 = vrcp.pop %v1528
    %v1545 = vrcp.pop %v1529
    %v1546 = vrcp.pop %v1530
    %v1547 = vrcp.pop %v1531
    %v1548 = vrcp.pop %v1532
    %v1549 = vrcp.pop %v1533
    %v1550 = vmul.f32 %v1406, %v1534
    %v1551 = vmul.f32 %v1407, %v1534
    %v1552 = vmul.f32 %v1408, %v1535
    %v1553 = vmul.f32 %v1409, %v1535
    %v1554 = vmul.f32 %v1410, %v1536
    %v1555 = vmul.f32 %v1411, %v1536
    %v1556 = vmul.f32 %v1412, %v1537
    %v1557 = vmul.f32 %v1413, %v1537
    %v1558 = vmul.f32 %v1414, %v1538
    %v1559 = vmul.f32 %v1415, %v1538
    %v1560 = vmul.f32 %v1416, %v1539
    %v1561 = vmul.f32 %v1417, %v1539
    %v1562 = vmul.f32 %v1418, %v1540
    %v1563 = vmul.f32 %v1419, %v1540
    %v1564 = vmul.f32 %v1420, %v1541
    %v1565 = vmul.f32 %v1421, %v1541
    %v1566 = vmul.f32 %v1422, %v1542
    %v1567 = vmul.f32 %v1423, %v1542
    %v1568 = vmul.f32 %v1424, %v1543
    %v1569 = vmul.f32 %v1425, %v1543
    %v1570 = vmul.f32 %v1426, %v1544
    %v1571 = vmul.f32 %v1427, %v1544
    %v1572 = vmul.f32 %v1428, %v1545
    %v1573 = vmul.f32 %v1429, %v1545
    %v1574 = vmul.f32 %v1430, %v1546
    %v1575 = vmul.f32 %v1431, %v1546
    %v1576 = vmul.f32 %v1432, %v1547
    %v1577 = vmul.f32 %v1433, %v1547
    %v1578 = vmul.f32 %v1434, %v1548
    %v1579 = vmul.f32 %v1435, %v1548
    %v1580 = vmul.f32 %v1436, %v1549
    %v1581 = vmul.f32 %v1437, %v1549
    %1582 = vmatprep.subr.mxu0 0.0
    %1583 = vmatpush1.xpose.msra.mxu0 0.0
    %1584 = vmatprep.subr.mxu0 0.0
    %1585 = vmatpush1.xpose.msra.mxu0 0.0
    %1586 = vmatprep.subr.mxu0 0.0
    %1587 = vmatpush1.xpose.msra.mxu0 0.0
    %1588 = vmatprep.subr.mxu0 0.0
    %1589 = vmatpush1.xpose.msra.mxu0 0.0
    %1590 = vmatprep.subr.mxu0 0.0
    %1591 = vmatpush1.xpose.msra.mxu0 0.0
    %1592 = vmatprep.subr.mxu0 0.0
    %1593 = vmatpush1.xpose.msra.mxu0 0.0
    %1594 = vmatprep.subr.mxu0 0.0
    %1595 = vmatpush1.xpose.msra.mxu0 0.0
    %1596 = vmatprep.subr.mxu0 0.0
    %1597 = vmatpush1.xpose.msra.mxu0 0.0
    %1598 = vmatprep.subr.mxu0 %v1125
    %1599 = vmatpush1.xpose.msra.mxu0 %v1124
    %1600 = vmatprep.subr.mxu0 %v1123
    %1601 = vmatpush1.xpose.msra.mxu0 %v1122
    %1602 = vmatprep.subr.mxu0 %v1121
    %1603 = vmatpush1.xpose.msra.mxu0 %v1120
    %1604 = vmatprep.subr.mxu0 %v1119
    %1605 = vmatpush1.xpose.msra.mxu0 %v1118
    %1606 = vmatprep.subr.mxu0 %v1117
    %1607 = vmatpush1.xpose.msra.mxu0 %v1116
    %1608 = vmatprep.subr.mxu0 %v1115
    %1609 = vmatpush1.xpose.msra.mxu0 %v1114
    %1610 = vmatprep.subr.mxu0 %v1113
    %1611 = vmatpush1.xpose.msra.mxu0 %v1112
    %1612 = vmatprep.subr.mxu0 %v1111
    %1613 = vmatpush1.xpose.msra.mxu0 %v1110
    %1614 = vmatprep.subr.mxu0 0.0
    %1615 = vmatpush2.xpose.msra.mxu0 0.0
    %1616 = vmatprep.subr.mxu0 0.0
    %1617 = vmatpush2.xpose.msra.mxu0 0.0
    %1618 = vmatprep.subr.mxu0 0.0
    %1619 = vmatpush2.xpose.msra.mxu0 0.0
    %1620 = vmatprep.subr.mxu0 0.0
    %1621 = vmatpush2.xpose.msra.mxu0 0.0
    %1622 = vmatprep.subr.mxu0 0.0
    %1623 = vmatpush2.xpose.msra.mxu0 0.0
    %1624 = vmatprep.subr.mxu0 0.0
    %1625 = vmatpush2.xpose.msra.mxu0 0.0
    %1626 = vmatprep.subr.mxu0 0.0
    %1627 = vmatpush2.xpose.msra.mxu0 0.0
    %1628 = vmatprep.subr.mxu0 0.0
    %1629 = vmatpush2.xpose.msra.mxu0 0.0
    %1630 = vmatprep.subr.mxu0 0.0
    %1631 = vmatpush2.xpose.msra.mxu0 0.0
    %1632 = vmatprep.subr.mxu0 0.0
    %1633 = vmatpush2.xpose.msra.mxu0 0.0
    %1634 = vmatprep.subr.mxu0 0.0
    %1635 = vmatpush2.xpose.msra.mxu0 0.0
    %1636 = vmatprep.subr.mxu0 0.0
    %1637 = vmatpush2.xpose.msra.mxu0 0.0
    %1638 = vmatprep.subr.mxu0 0.0
    %1639 = vmatpush2.xpose.msra.mxu0 0.0
    %1640 = vmatprep.subr.mxu0 0.0
    %1641 = vmatpush2.xpose.msra.mxu0 0.0
    %1642 = vmatprep.subr.mxu0 0.0
    %1643 = vmatpush2.xpose.msra.mxu0 0.0
    %1644 = vmatprep.subr.mxu0 0.0
    %1645 = vmatpush2.xpose.msra.mxu0 0.0
    %1646 = vmatprep.mubr.f32.mxu0 %v823
    %1647 = vmatmul.mubr.f32.gmra.mxu0 %v822
    %v1648 = vpop.f32.mrf.mxu0
    %v1649 = vadd.f32 0.0, %v1648
    %v1650 = vpop.f32.mrf.mxu0
    %1651 = vdwg.mxu0
    %1652 = vmatprep.subr.mxu0 0.0
    %1653 = vmatpush1.xpose.msra.mxu0 0.0
    %1654 = vmatprep.subr.mxu0 0.0
    %1655 = vmatpush1.xpose.msra.mxu0 0.0
    %1656 = vmatprep.subr.mxu0 0.0
    %1657 = vmatpush1.xpose.msra.mxu0 0.0
    %1658 = vmatprep.subr.mxu0 0.0
    %1659 = vmatpush1.xpose.msra.mxu0 0.0
    %1660 = vmatprep.subr.mxu0 0.0
    %1661 = vmatpush1.xpose.msra.mxu0 0.0
    %1662 = vmatprep.subr.mxu0 0.0
    %1663 = vmatpush1.xpose.msra.mxu0 0.0
    %1664 = vmatprep.subr.mxu0 0.0
    %1665 = vmatpush1.xpose.msra.mxu0 0.0
    %1666 = vmatprep.subr.mxu0 0.0
    %1667 = vmatpush1.xpose.msra.mxu0 0.0
    %1668 = vmatprep.subr.mxu0 %v1141
    %1669 = vmatpush1.xpose.msra.mxu0 %v1140
    %1670 = vmatprep.subr.mxu0 %v1139
    %1671 = vmatpush1.xpose.msra.mxu0 %v1138
    %1672 = vmatprep.subr.mxu0 %v1137
    %1673 = vmatpush1.xpose.msra.mxu0 %v1136
    %1674 = vmatprep.subr.mxu0 %v1135
    %1675 = vmatpush1.xpose.msra.mxu0 %v1134
    %1676 = vmatprep.subr.mxu0 %v1133
    %1677 = vmatpush1.xpose.msra.mxu0 %v1132
    %1678 = vmatprep.subr.mxu0 %v1131
    %1679 = vmatpush1.xpose.msra.mxu0 %v1130
    %1680 = vmatprep.subr.mxu0 %v1129
    %1681 = vmatpush1.xpose.msra.mxu0 %v1128
    %1682 = vmatprep.subr.mxu0 %v1127
    %1683 = vmatpush1.xpose.msra.mxu0 %v1126
    %1684 = vmatprep.subr.mxu0 0.0
    %1685 = vmatpush2.xpose.msra.mxu0 0.0
    %1686 = vmatprep.subr.mxu0 0.0
    %1687 = vmatpush2.xpose.msra.mxu0 0.0
    %1688 = vmatprep.subr.mxu0 0.0
    %1689 = vmatpush2.xpose.msra.mxu0 0.0
    %1690 = vmatprep.subr.mxu0 0.0
    %1691 = vmatpush2.xpose.msra.mxu0 0.0
    %1692 = vmatprep.subr.mxu0 0.0
    %1693 = vmatpush2.xpose.msra.mxu0 0.0
    %1694 = vmatprep.subr.mxu0 0.0
    %1695 = vmatpush2.xpose.msra.mxu0 0.0
    %1696 = vmatprep.subr.mxu0 0.0
    %1697 = vmatpush2.xpose.msra.mxu0 0.0
    %1698 = vmatprep.subr.mxu0 0.0
    %1699 = vmatpush2.xpose.msra.mxu0 0.0
    %1700 = vmatprep.subr.mxu0 0.0
    %1701 = vmatpush2.xpose.msra.mxu0 0.0
    %1702 = vmatprep.subr.mxu0 0.0
    %1703 = vmatpush2.xpose.msra.mxu0 0.0
    %1704 = vmatprep.subr.mxu0 0.0
    %1705 = vmatpush2.xpose.msra.mxu0 0.0
    %1706 = vmatprep.subr.mxu0 0.0
    %1707 = vmatpush2.xpose.msra.mxu0 0.0
    %1708 = vmatprep.subr.mxu0 0.0
    %1709 = vmatpush2.xpose.msra.mxu0 0.0
    %1710 = vmatprep.subr.mxu0 0.0
    %1711 = vmatpush2.xpose.msra.mxu0 0.0
    %1712 = vmatprep.subr.mxu0 0.0
    %1713 = vmatpush2.xpose.msra.mxu0 0.0
    %1714 = vmatprep.subr.mxu0 0.0
    %1715 = vmatpush2.xpose.msra.mxu0 0.0
    %1716 = vmatprep.mubr.f32.mxu0 %v825
    %1717 = vmatmul.mubr.f32.gmra.mxu0 %v824
    %v1718 = vpop.f32.mrf.mxu0
    %v1719 = vadd.f32 0.0, %v1718
    %v1720 = vpop.f32.mrf.mxu0
    %1721 = vdwg.mxu0
    %1723 = vset.pattern.permute.xlu0 0
    %1724 = vperm.xlu0 %1723, %v373
    %v1725 = vpop.permute.xlu0 %1724
    %1728 = vset.pattern.permute.xlu0 0
    %1729 = vperm.xlu0 %1728, %v374
    %v1730 = vpop.permute.xlu0 %1729
    %v1734 = vlaneseq
    %v1735 = vshrl.u32 %v1734, 7
    %v1736 = vsub.s32 0, %v1735
    %v1737 = vrot.slane %v375, %v1736
    %v1738 = vlaneseq
    %v1739 = vshrl.u32 %v1738, 7
    %v1740 = vsub.s32 0, %v1739
    %v1741 = vrot.slane %v376, %v1740
    %v1744 = vadd.f32 %v1725, %v1737
    %v1745 = vadd.f32 %v1730, %v1741
    %vm1746 = vcmp.gt.f32.partialorder %v1744, 0.5
    %vm1747 = vcmp.gt.f32.partialorder %v1745, 0.5
    %v1748 = vsel %vm1746, 0.0, %v1649
    %v1749 = vsel %vm1747, 0.0, %v1719
    %v1750 = vmul.f32 %v1748, %v1748
    %v1751 = vmul.f32 %v1749, %v1749
    %vm1752 = vcmask 523264
    %v1754 = vsel %vm1752, %v1750, 0
    %v1757 = vsel %vm1752, %v1751, 0
    %1759 = vmatprep.subr.mxu0 0.0
    %1760 = vmatpush1.msra.mxu0 0.0
    %1761 = vmatprep.subr.mxu0 0.0
    %1762 = vmatpush1.msra.mxu0 0.0
    %1763 = vmatprep.subr.mxu0 0.0
    %1764 = vmatpush1.msra.mxu0 0.0
    %1765 = vmatprep.subr.mxu0 0.0
    %1766 = vmatpush1.msra.mxu0 0.0
    %1767 = vmatprep.subr.mxu0 0.0
    %1768 = vmatpush1.msra.mxu0 0.0
    %1769 = vmatprep.subr.mxu0 0.0
    %1770 = vmatpush1.msra.mxu0 0.0
    %1771 = vmatprep.subr.mxu0 0.0
    %1772 = vmatpush1.msra.mxu0 0.0
    %1773 = vmatprep.subr.mxu0 0.0
    %1774 = vmatpush1.msra.mxu0 0.0
    %1775 = vmatprep.subr.mxu0 0.0
    %1776 = vmatpush1.msra.mxu0 %v372
    %1777 = vmatprep.subr.mxu0 0.0
    %1778 = vmatpush1.msra.mxu0 %v371
    %1779 = vmatprep.subr.mxu0 0.0
    %1780 = vmatpush1.msra.mxu0 %v370
    %1781 = vmatprep.subr.mxu0 0.0
    %1782 = vmatpush1.msra.mxu0 %v369
    %1783 = vmatprep.subr.mxu0 0.0
    %1784 = vmatpush1.msra.mxu0 %v368
    %1785 = vmatprep.subr.mxu0 0.0
    %1786 = vmatpush1.msra.mxu0 %v367
    %1787 = vmatprep.subr.mxu0 0.0
    %1788 = vmatpush1.msra.mxu0 %v366
    %1789 = vmatprep.subr.mxu0 0.0
    %1790 = vmatpush1.msra.mxu0 %v365
    %1791 = vmatprep.subr.mxu0 0.0
    %1792 = vmatpush2.msra.mxu0 0.0
    %1793 = vmatprep.subr.mxu0 0.0
    %1794 = vmatpush2.msra.mxu0 0.0
    %1795 = vmatprep.subr.mxu0 0.0
    %1796 = vmatpush2.msra.mxu0 0.0
    %1797 = vmatprep.subr.mxu0 0.0
    %1798 = vmatpush2.msra.mxu0 0.0
    %1799 = vmatprep.subr.mxu0 0.0
    %1800 = vmatpush2.msra.mxu0 0.0
    %1801 = vmatprep.subr.mxu0 0.0
    %1802 = vmatpush2.msra.mxu0 0.0
    %1803 = vmatprep.subr.mxu0 0.0
    %1804 = vmatpush2.msra.mxu0 0.0
    %1805 = vmatprep.subr.mxu0 0.0
    %1806 = vmatpush2.msra.mxu0 0.0
    %1807 = vmatprep.subr.mxu0 0.0
    %1808 = vmatpush2.msra.mxu0 0.0
    %1809 = vmatprep.subr.mxu0 0.0
    %1810 = vmatpush2.msra.mxu0 0.0
    %1811 = vmatprep.subr.mxu0 0.0
    %1812 = vmatpush2.msra.mxu0 0.0
    %1813 = vmatprep.subr.mxu0 0.0
    %1814 = vmatpush2.msra.mxu0 0.0
    %1815 = vmatprep.subr.mxu0 0.0
    %1816 = vmatpush2.msra.mxu0 0.0
    %1817 = vmatprep.subr.mxu0 0.0
    %1818 = vmatpush2.msra.mxu0 0.0
    %1819 = vmatprep.subr.mxu0 0.0
    %1820 = vmatpush2.msra.mxu0 0.0
    %1821 = vmatprep.subr.mxu0 0.0
    %1822 = vmatpush2.msra.mxu0 0.0
    %1823 = vmatprep.mubr.f32.mxu0 0.0
    %1824 = vmatmul.mubr.f32.gmra.mxu0 %v1754
    %v1825 = vpop.f32.mrf.mxu0
    %v1826 = vadd.f32 0.0, %v1825
    %v1827 = vpop.f32.mrf.mxu0
    %1828 = vmatprep.mubr.f32.mxu0 0.0
    %1829 = vmatmul.mubr.f32.gmra.mxu0 %v1757
    %v1830 = vpop.f32.mrf.mxu0
    %v1831 = vadd.f32 0.0, %v1830
    %v1832 = vpop.f32.mrf.mxu0
    %1833 = vdwg.mxu0
    %v1834 = vmax.f32 %v1826, 1e-38
    %v1835 = vmax.f32 %v1831, 1e-38
    %v1836 = vrcp.pop %v1834
    %v1837 = vrcp.pop %v1835
    %v1838 = vmul.f32 %v1750, %v1836
    %v1839 = vmul.f32 %v1751, %v1837
    %v1841 = vsel %vm1752, %v1838, 0
    %1843 = vmatprep.subr.mxu0 0.0
    %1844 = vmatpush1.msra.mxu0 0.0
    %1845 = vmatprep.subr.mxu0 0.0
    %1846 = vmatpush1.msra.mxu0 0.0
    %1847 = vmatprep.subr.mxu0 0.0
    %1848 = vmatpush1.msra.mxu0 0.0
    %1849 = vmatprep.subr.mxu0 0.0
    %1850 = vmatpush1.msra.mxu0 0.0
    %1851 = vmatprep.subr.mxu0 0.0
    %1852 = vmatpush1.msra.mxu0 0.0
    %1853 = vmatprep.subr.mxu0 0.0
    %1854 = vmatpush1.msra.mxu0 0.0
    %1855 = vmatprep.subr.mxu0 0.0
    %1856 = vmatpush1.msra.mxu0 0.0
    %1857 = vmatprep.subr.mxu0 0.0
    %1858 = vmatpush1.msra.mxu0 0.0
    %1859 = vmatprep.subr.mxu0 %v1565
    %1860 = vmatpush1.msra.mxu0 %v1564
    %1861 = vmatprep.subr.mxu0 %v1563
    %1862 = vmatpush1.msra.mxu0 %v1562
    %1863 = vmatprep.subr.mxu0 %v1561
    %1864 = vmatpush1.msra.mxu0 %v1560
    %1865 = vmatprep.subr.mxu0 %v1559
    %1866 = vmatpush1.msra.mxu0 %v1558
    %1867 = vmatprep.subr.mxu0 %v1557
    %1868 = vmatpush1.msra.mxu0 %v1556
    %1869 = vmatprep.subr.mxu0 %v1555
    %1870 = vmatpush1.msra.mxu0 %v1554
    %1871 = vmatprep.subr.mxu0 %v1553
    %1872 = vmatpush1.msra.mxu0 %v1552
    %1873 = vmatprep.subr.mxu0 %v1551
    %1874 = vmatpush1.msra.mxu0 %v1550
    %1875 = vmatprep.subr.mxu0 0.0
    %1876 = vmatpush2.msra.mxu0 0.0
    %1877 = vmatprep.subr.mxu0 0.0
    %1878 = vmatpush2.msra.mxu0 0.0
    %1879 = vmatprep.subr.mxu0 0.0
    %1880 = vmatpush2.msra.mxu0 0.0
    %1881 = vmatprep.subr.mxu0 0.0
    %1882 = vmatpush2.msra.mxu0 0.0
    %1883 = vmatprep.subr.mxu0 0.0
    %1884 = vmatpush2.msra.mxu0 0.0
    %1885 = vmatprep.subr.mxu0 0.0
    %1886 = vmatpush2.msra.mxu0 0.0
    %1887 = vmatprep.subr.mxu0 0.0
    %1888 = vmatpush2.msra.mxu0 0.0
    %1889 = vmatprep.subr.mxu0 0.0
    %1890 = vmatpush2.msra.mxu0 0.0
    %1891 = vmatprep.subr.mxu0 0.0
    %1892 = vmatpush2.msra.mxu0 0.0
    %1893 = vmatprep.subr.mxu0 0.0
    %1894 = vmatpush2.msra.mxu0 0.0
    %1895 = vmatprep.subr.mxu0 0.0
    %1896 = vmatpush2.msra.mxu0 0.0
    %1897 = vmatprep.subr.mxu0 0.0
    %1898 = vmatpush2.msra.mxu0 0.0
    %1899 = vmatprep.subr.mxu0 0.0
    %1900 = vmatpush2.msra.mxu0 0.0
    %1901 = vmatprep.subr.mxu0 0.0
    %1902 = vmatpush2.msra.mxu0 0.0
    %1903 = vmatprep.subr.mxu0 0.0
    %1904 = vmatpush2.msra.mxu0 0.0
    %1905 = vmatprep.subr.mxu0 0.0
    %1906 = vmatpush2.msra.mxu0 0.0
    %1907 = vmatprep.mubr.f32.mxu0 0.0
    %1908 = vmatmul.mubr.f32.gmra.mxu0 %v1841
    %v1909 = vpop.f32.mrf.mxu0
    %v1910 = vadd.f32 0.0, %v1909
    %v1911 = vpop.f32.mrf.mxu0
    %v1912 = vadd.f32 0.0, %v1911
    %1913 = vdwg.mxu0
    %v1915 = vsel %vm1752, %v1839, 0
    %1917 = vmatprep.subr.mxu0 0.0
    %1918 = vmatpush1.msra.mxu0 0.0
    %1919 = vmatprep.subr.mxu0 0.0
    %1920 = vmatpush1.msra.mxu0 0.0
    %1921 = vmatprep.subr.mxu0 0.0
    %1922 = vmatpush1.msra.mxu0 0.0
    %1923 = vmatprep.subr.mxu0 0.0
    %1924 = vmatpush1.msra.mxu0 0.0
    %1925 = vmatprep.subr.mxu0 0.0
    %1926 = vmatpush1.msra.mxu0 0.0
    %1927 = vmatprep.subr.mxu0 0.0
    %1928 = vmatpush1.msra.mxu0 0.0
    %1929 = vmatprep.subr.mxu0 0.0
    %1930 = vmatpush1.msra.mxu0 0.0
    %1931 = vmatprep.subr.mxu0 0.0
    %1932 = vmatpush1.msra.mxu0 0.0
    %1933 = vmatprep.subr.mxu0 %v1581
    %1934 = vmatpush1.msra.mxu0 %v1580
    %1935 = vmatprep.subr.mxu0 %v1579
    %1936 = vmatpush1.msra.mxu0 %v1578
    %1937 = vmatprep.subr.mxu0 %v1577
    %1938 = vmatpush1.msra.mxu0 %v1576
    %1939 = vmatprep.subr.mxu0 %v1575
    %1940 = vmatpush1.msra.mxu0 %v1574
    %1941 = vmatprep.subr.mxu0 %v1573
    %1942 = vmatpush1.msra.mxu0 %v1572
    %1943 = vmatprep.subr.mxu0 %v1571
    %1944 = vmatpush1.msra.mxu0 %v1570
    %1945 = vmatprep.subr.mxu0 %v1569
    %1946 = vmatpush1.msra.mxu0 %v1568
    %1947 = vmatprep.subr.mxu0 %v1567
    %1948 = vmatpush1.msra.mxu0 %v1566
    %1949 = vmatprep.subr.mxu0 0.0
    %1950 = vmatpush2.msra.mxu0 0.0
    %1951 = vmatprep.subr.mxu0 0.0
    %1952 = vmatpush2.msra.mxu0 0.0
    %1953 = vmatprep.subr.mxu0 0.0
    %1954 = vmatpush2.msra.mxu0 0.0
    %1955 = vmatprep.subr.mxu0 0.0
    %1956 = vmatpush2.msra.mxu0 0.0
    %1957 = vmatprep.subr.mxu0 0.0
    %1958 = vmatpush2.msra.mxu0 0.0
    %1959 = vmatprep.subr.mxu0 0.0
    %1960 = vmatpush2.msra.mxu0 0.0
    %1961 = vmatprep.subr.mxu0 0.0
    %1962 = vmatpush2.msra.mxu0 0.0
    %1963 = vmatprep.subr.mxu0 0.0
    %1964 = vmatpush2.msra.mxu0 0.0
    %1965 = vmatprep.subr.mxu0 0.0
    %1966 = vmatpush2.msra.mxu0 0.0
    %1967 = vmatprep.subr.mxu0 0.0
    %1968 = vmatpush2.msra.mxu0 0.0
    %1969 = vmatprep.subr.mxu0 0.0
    %1970 = vmatpush2.msra.mxu0 0.0
    %1971 = vmatprep.subr.mxu0 0.0
    %1972 = vmatpush2.msra.mxu0 0.0
    %1973 = vmatprep.subr.mxu0 0.0
    %1974 = vmatpush2.msra.mxu0 0.0
    %1975 = vmatprep.subr.mxu0 0.0
    %1976 = vmatpush2.msra.mxu0 0.0
    %1977 = vmatprep.subr.mxu0 0.0
    %1978 = vmatpush2.msra.mxu0 0.0
    %1979 = vmatprep.subr.mxu0 0.0
    %1980 = vmatpush2.msra.mxu0 0.0
    %1981 = vmatprep.mubr.f32.mxu0 0.0
    %1982 = vmatmul.mubr.f32.gmra.mxu0 %v1915
    %v1983 = vpop.f32.mrf.mxu0
    %v1984 = vadd.f32 0.0, %v1983
    %v1985 = vpop.f32.mrf.mxu0
    %v1986 = vadd.f32 0.0, %v1985
    %1987 = vdwg.mxu0
    %v1988 = vadd.f32 %v33, %v1910
    %v1989 = vadd.f32 %v34, %v1912
    %v1990 = vadd.f32 %v35, %v1984
    %v1991 = vadd.f32 %v36, %v1986
    %1992 = vst [vmem:[#allocation2] sm:$0xff] %v1988
    %1993 = vst [vmem:[#allocation2 + $0x8] sm:$0xff] %v1989
    %1994 = vst [vmem:[#allocation2 + $0x10] sm:$0xff] %v1990
    %1995 = vst [vmem:[#allocation2 + $0x18] sm:$0xff] %v1991
    // Predicated region
    $region38: #{res_encoder_base.1} parent=1 // pred_check
      _
    $region39: #{res_encoder_base.1} parent=1 // pred_check_branch
      %1997 = sbr.rel (0) target = $region41
    $region40: #{res_encoder_base.1} parent=1 // pred_region
      %s1999 = ssub.s32 512, 512
      %2000 = vsyncadd [#allocation3], %s1999
      %s2001 = sshll.u32 [#allocation2], 4
      %s2002 = int_to_ptr.vmem [resolvable:$true] %s2001
      %2007 = dma.vmem_to_hbm [thread:$0]  %s2002, 512, %s9, [#allocation3], 256, 256, 16
    $region41: #{res_encoder_base.1} parent=1 // pred_fallthru
      _
    // Predicated region
    $region42: #{res_encoder_base.1} parent=1 // pred_check
      _
    $region43: #{res_encoder_base.1} parent=1 // pred_check_branch
      %2009 = sbr.rel (0) target = $region45
    $region44: #{res_encoder_base.1} parent=1 // pred_region
      %2010 = dma.done [#allocation3], 512
    $region45: #{res_encoder_base.1} parent=1 // pred_fallthru
      _
    %2011 = vsyncpa [#allocation3], 1

</llo_original>
